<compile_context>
chip_gen: v6e
topology: v6e:2x2x1
jax: 0.10.0
libtpu: 0.0.40
codegen_flags: <defaults>
</compile_context>

<pallas_src>
import jax
import jax.numpy as jnp
from jax.experimental import pallas as pl
from jax.experimental.pallas import tpu as pltpu


DIMS = [(8, 32), (32, 128), (128, 64), (64, 8), (8, 1)]


def mlp_kernel(x_ref,
               w1_ref, b1_ref,
               w2_ref, b2_ref,
               w3_ref, b3_ref,
               w4_ref, b4_ref,
               w5t_ref, b5_ref,
               o_ref):
    """Fused MLP forward for one batch tile; weights stay resident in VMEM."""
    x = x_ref[...]

    # Hoisted single reads of the (1, out) bias rows.
    b1 = b1_ref[...]
    b2 = b2_ref[...]
    b3 = b3_ref[...]
    b4 = b4_ref[...]
    b5 = b5_ref[...]

    h = jnp.dot(x, w1_ref[...], preferred_element_type=jnp.float32) + b1
    h = jnp.maximum(h, 0.0)

    h = jnp.dot(h, w2_ref[...], preferred_element_type=jnp.float32) + b2
    h = jnp.maximum(h, 0.0)

    h = jnp.dot(h, w3_ref[...], preferred_element_type=jnp.float32) + b3
    h = jnp.maximum(h, 0.0)

    h = jnp.dot(h, w4_ref[...], preferred_element_type=jnp.float32) + b4
    h = jnp.maximum(h, 0.0)

    # Layer 5 (8 -> 1): N=1 matmul would occupy a full MXU pass at <1%
    # utilization.  Do it as a VPU broadcast-multiply + XLU lane reduction.
    # w5t_ref is (1, 8); h is (TILE_B, 8).
    logits = jnp.sum(h * w5t_ref[...], axis=-1, keepdims=True) + b5

    o_ref[...] = jax.nn.sigmoid(logits).astype(o_ref.dtype)


def mlp_forward(x, params, *, tile_b=None):
    """x: (B, 8) float32. params: list of (W, b) with W:(in,out), b:(1,out)."""
    B, D_in = x.shape
    assert D_in == DIMS[0][0]

    # Tile sized against v7x's 64 MiB VMEM (activations ~1 KB/row in f32,
    # so a 4K-row tile is ~4 MiB + tiny double-buffered x/out blocks).
    if tile_b is None:
        tile_b = min(B, 4096)
    if tile_b != B:
        tile_b = max(8, (tile_b // 8) * 8)  # keep the (8, 128) tiling rule

    grid = (pl.cdiv(B, tile_b),)

    (w1, b1), (w2, b2), (w3, b3), (w4, b4), (w5, b5) = params
    w5t = w5.T  # (1, 8): lane-major row for the VPU tail layer

    def resident(shape):
        # Full block, constant index_map -> stays in VMEM across grid steps.
        return pl.BlockSpec(shape, lambda i: (0, 0))

    in_specs = [
        pl.BlockSpec((tile_b, D_in), lambda i: (i, 0)),   # x tile
        resident(w1.shape), resident(b1.shape),
        resident(w2.shape), resident(b2.shape),
        resident(w3.shape), resident(b3.shape),
        resident(w4.shape), resident(b4.shape),
        resident(w5t.shape), resident(b5.shape),
    ]
    out_specs = pl.BlockSpec((tile_b, 1), lambda i: (i, 0))

    # Advisory cost hint for XLA's scheduler.
    per_row_flops = 2 * sum(fi * fo for fi, fo in DIMS)
    weight_bytes = sum(w.size * w.dtype.itemsize + b_.size * b_.dtype.itemsize
                       for w, b_ in params)
    cost = pl.CostEstimate(
        flops=B * per_row_flops,
        transcendentals=B,                                   # final sigmoid
        bytes_accessed=B * (D_in + 1) * 4 + weight_bytes,
    )

    out = pl.pallas_call(
        mlp_kernel,
        out_shape=jax.ShapeDtypeStruct((B, 1), jnp.float32),
        grid=grid,
        in_specs=in_specs,
        out_specs=out_specs,
        compiler_params=pltpu.CompilerParams(
            dimension_semantics=("parallel",),    # megacore split on v7x
            vmem_limit_bytes=32 * 1024 * 1024,
        ),
        cost_estimate=cost,
    )(x, w1, b1, w2, b2, w3, b3, w4, b4, w5t, b5)
    return out


def init_params(key):
    """Deterministic init mimicking torch.nn.Linear default:
    U(-1/sqrt(fan_in), 1/sqrt(fan_in)) for both weight and bias."""
    params = []
    for (fan_in, fan_out) in DIMS:
        key, kw, kb = jax.random.split(key, 3)
        bound = 1.0 / (fan_in ** 0.5)
        w = jax.random.uniform(kw, (fan_in, fan_out), jnp.float32, -bound, bound)
        b = jax.random.uniform(kb, (1, fan_out), jnp.float32, -bound, bound)
        params.append((w, b))
    return params


def reference_forward(x, params):
    h = x
    for i, (w, b) in enumerate(params):
        h = h @ w + b
        if i < len(params) - 1:
            h = jnp.maximum(h, 0.0)
        else:
            h = jax.nn.sigmoid(h)
    return h


if __name__ == "__main__":
    key = jax.random.PRNGKey(0)
    kx, kp = jax.random.split(key)

    B = 512                    # multiple batch tiles -> exercises the grid
    TILE_B = 128               # grid = (4,); weights stay resident across steps
    x = jax.random.normal(kx, (B, 8), jnp.float32)
    params = init_params(kp)

    y = mlp_forward(x, params, tile_b=TILE_B)
    y = jax.block_until_ready(y)

    y_ref = reference_forward(x, params)
    assert y.shape == (B, 1), y.shape
    assert jnp.allclose(y, y_ref, atol=1e-5, rtol=1e-5), \
        f"max abs diff {jnp.max(jnp.abs(y - y_ref))}"

    print("KERNEL_OK")
</pallas_src>

<mosaic_0001>
module attributes {stable_mosaic.version = 11 : i64} {
  func.func @mlp_kernel(%arg0: i32, %arg1: memref<128x8xf32, #tpu.memory_space<vmem>>, %arg2: memref<8x32xf32, #tpu.memory_space<vmem>>, %arg3: memref<1x32xf32, #tpu.memory_space<vmem>>, %arg4: memref<32x128xf32, #tpu.memory_space<vmem>>, %arg5: memref<1x128xf32, #tpu.memory_space<vmem>>, %arg6: memref<128x64xf32, #tpu.memory_space<vmem>>, %arg7: memref<1x64xf32, #tpu.memory_space<vmem>>, %arg8: memref<64x8xf32, #tpu.memory_space<vmem>>, %arg9: memref<1x8xf32, #tpu.memory_space<vmem>>, %arg10: memref<1x8xf32, #tpu.memory_space<vmem>>, %arg11: memref<1x1xf32, #tpu.memory_space<vmem>>, %arg12: memref<128x1xf32, #tpu.memory_space<vmem>>) attributes {dimension_semantics = [#tpu.dimension_semantics<parallel>], iteration_bounds = array<i64: 4>, scalar_prefetch = 0 : i64, scratch_operands = 0 : i64, tpu.core_type = #tpu.core_type<tc>, window_params = [{transform_indices = @transform_0, window_bounds = array<i64: 128, 8>}, {pipeline_mode = #tpu.pipeline_mode<synchronous>, transform_indices = @transform_1, window_bounds = array<i64: 8, 32>}, {pipeline_mode = #tpu.pipeline_mode<synchronous>, transform_indices = @transform_2, window_bounds = array<i64: 1, 32>}, {pipeline_mode = #tpu.pipeline_mode<synchronous>, transform_indices = @transform_3, window_bounds = array<i64: 32, 128>}, {pipeline_mode = #tpu.pipeline_mode<synchronous>, transform_indices = @transform_4, window_bounds = array<i64: 1, 128>}, {pipeline_mode = #tpu.pipeline_mode<synchronous>, transform_indices = @transform_5, window_bounds = array<i64: 128, 64>}, {pipeline_mode = #tpu.pipeline_mode<synchronous>, transform_indices = @transform_6, window_bounds = array<i64: 1, 64>}, {pipeline_mode = #tpu.pipeline_mode<synchronous>, transform_indices = @transform_7, window_bounds = array<i64: 64, 8>}, {pipeline_mode = #tpu.pipeline_mode<synchronous>, transform_indices = @transform_8, window_bounds = array<i64: 1, 8>}, {pipeline_mode = #tpu.pipeline_mode<synchronous>, transform_indices = @transform_9, window_bounds = array<i64: 1, 8>}, {pipeline_mode = #tpu.pipeline_mode<synchronous>, transform_indices = @transform_10, window_bounds = array<i64: 1, 1>}, {transform_indices = @transform_11, window_bounds = array<i64: 128, 1>}]} {
    %c0 = arith.constant 0 : index
    %c0_0 = arith.constant 0 : index
    %0 = vector.load %arg1[%c0, %c0_0] : memref<128x8xf32, #tpu.memory_space<vmem>>, vector<128x8xf32>
    %c0_1 = arith.constant 0 : index
    %c0_2 = arith.constant 0 : index
    %1 = vector.load %arg3[%c0_1, %c0_2] : memref<1x32xf32, #tpu.memory_space<vmem>>, vector<1x32xf32>
    %c0_3 = arith.constant 0 : index
    %c0_4 = arith.constant 0 : index
    %2 = vector.load %arg5[%c0_3, %c0_4] : memref<1x128xf32, #tpu.memory_space<vmem>>, vector<1x128xf32>
    %c0_5 = arith.constant 0 : index
    %c0_6 = arith.constant 0 : index
    %3 = vector.load %arg7[%c0_5, %c0_6] : memref<1x64xf32, #tpu.memory_space<vmem>>, vector<1x64xf32>
    %c0_7 = arith.constant 0 : index
    %c0_8 = arith.constant 0 : index
    %4 = vector.load %arg9[%c0_7, %c0_8] : memref<1x8xf32, #tpu.memory_space<vmem>>, vector<1x8xf32>
    %c0_9 = arith.constant 0 : index
    %c0_10 = arith.constant 0 : index
    %5 = vector.load %arg11[%c0_9, %c0_10] : memref<1x1xf32, #tpu.memory_space<vmem>>, vector<1x1xf32>
    %c0_11 = arith.constant 0 : index
    %c0_12 = arith.constant 0 : index
    %6 = vector.load %arg2[%c0_11, %c0_12] : memref<8x32xf32, #tpu.memory_space<vmem>>, vector<8x32xf32>
    %cst = arith.constant dense<0.000000e+00> : vector<128x32xf32>
    %7 = tpu.matmul %0, %6, %cst {dimension_numbers = #tpu.dot_dimension_numbers<[1], [0], [0], [1], [0, 0, 1, 1], [], []>} : vector<128x8xf32>, vector<8x32xf32>, vector<128x32xf32> -> vector<128x32xf32>
    %8 = vector.broadcast %1 : vector<1x32xf32> to vector<128x32xf32>
    %9 = arith.addf %7, %8 : vector<128x32xf32>
    %cst_13 = arith.constant 0.000000e+00 : f32
    %10 = vector.broadcast %cst_13 : f32 to vector<128x32xf32>
    %11 = arith.maximumf %9, %10 : vector<128x32xf32>
    %c0_14 = arith.constant 0 : index
    %c0_15 = arith.constant 0 : index
    %12 = vector.load %arg4[%c0_14, %c0_15] : memref<32x128xf32, #tpu.memory_space<vmem>>, vector<32x128xf32>
    %cst_16 = arith.constant dense<0.000000e+00> : vector<128x128xf32>
    %13 = tpu.matmul %11, %12, %cst_16 {dimension_numbers = #tpu.dot_dimension_numbers<[1], [0], [0], [1], [0, 0, 1, 1], [], []>} : vector<128x32xf32>, vector<32x128xf32>, vector<128x128xf32> -> vector<128x128xf32>
    %14 = vector.broadcast %2 : vector<1x128xf32> to vector<128x128xf32>
    %15 = arith.addf %13, %14 : vector<128x128xf32>
    %cst_17 = arith.constant 0.000000e+00 : f32
    %16 = vector.broadcast %cst_17 : f32 to vector<128x128xf32>
    %17 = arith.maximumf %15, %16 : vector<128x128xf32>
    %c0_18 = arith.constant 0 : index
    %c0_19 = arith.constant 0 : index
    %18 = vector.load %arg6[%c0_18, %c0_19] : memref<128x64xf32, #tpu.memory_space<vmem>>, vector<128x64xf32>
    %cst_20 = arith.constant dense<0.000000e+00> : vector<128x64xf32>
    %19 = tpu.matmul %17, %18, %cst_20 {dimension_numbers = #tpu.dot_dimension_numbers<[1], [0], [0], [1], [0, 0, 1, 1], [], []>} : vector<128x128xf32>, vector<128x64xf32>, vector<128x64xf32> -> vector<128x64xf32>
    %20 = vector.broadcast %3 : vector<1x64xf32> to vector<128x64xf32>
    %21 = arith.addf %19, %20 : vector<128x64xf32>
    %cst_21 = arith.constant 0.000000e+00 : f32
    %22 = vector.broadcast %cst_21 : f32 to vector<128x64xf32>
    %23 = arith.maximumf %21, %22 : vector<128x64xf32>
    %c0_22 = arith.constant 0 : index
    %c0_23 = arith.constant 0 : index
    %24 = vector.load %arg8[%c0_22, %c0_23] : memref<64x8xf32, #tpu.memory_space<vmem>>, vector<64x8xf32>
    %cst_24 = arith.constant dense<0.000000e+00> : vector<128x8xf32>
    %25 = tpu.matmul %23, %24, %cst_24 {dimension_numbers = #tpu.dot_dimension_numbers<[1], [0], [0], [1], [0, 0, 1, 1], [], []>} : vector<128x64xf32>, vector<64x8xf32>, vector<128x8xf32> -> vector<128x8xf32>
    %26 = vector.broadcast %4 : vector<1x8xf32> to vector<128x8xf32>
    %27 = arith.addf %25, %26 : vector<128x8xf32>
    %cst_25 = arith.constant 0.000000e+00 : f32
    %28 = vector.broadcast %cst_25 : f32 to vector<128x8xf32>
    %29 = arith.maximumf %27, %28 : vector<128x8xf32>
    %c0_26 = arith.constant 0 : index
    %c0_27 = arith.constant 0 : index
    %30 = vector.load %arg10[%c0_26, %c0_27] : memref<1x8xf32, #tpu.memory_space<vmem>>, vector<1x8xf32>
    %31 = vector.broadcast %30 : vector<1x8xf32> to vector<128x8xf32>
    %32 = arith.mulf %29, %31 : vector<128x8xf32>
    %cst_28 = arith.constant dense<0.000000e+00> : vector<128xf32>
    %33 = vector.multi_reduction <add>, %32, %cst_28 [1] : vector<128x8xf32> to vector<128xf32>
    %34 = vector.shape_cast %33 : vector<128xf32> to vector<128x1xf32>
    %35 = vector.broadcast %5 : vector<1x1xf32> to vector<128x1xf32>
    %36 = arith.addf %34, %35 : vector<128x1xf32>
    %37 = arith.negf %36 : vector<128x1xf32>
    %38 = math.exp %37 : vector<128x1xf32>
    %cst_29 = arith.constant 1.000000e+00 : f32
    %39 = vector.broadcast %cst_29 : f32 to vector<128x1xf32>
    %40 = arith.addf %39, %38 : vector<128x1xf32>
    %41 = arith.divf %39, %40 : vector<128x1xf32>
    %c0_30 = arith.constant 0 : index
    %c0_31 = arith.constant 0 : index
    %42 = vector.load %arg12[%c0_30, %c0_31] : memref<128x1xf32, #tpu.memory_space<vmem>>, vector<128x1xf32>
    tpu.vector_store %arg12[%c0_30, %c0_31], %41 {strides = array<i32>} : memref<128x1xf32, #tpu.memory_space<vmem>>, vector<128x1xf32>,
    return
  }
  func.func @transform_0(%arg0: i32) -> (i32, i32) {
    %c0_i32 = arith.constant 0 : i32
    %c0_i32_0 = arith.constant 0 : i32
    return %arg0, %c0_i32 : i32, i32
  }
  func.func @transform_1(%arg0: i32) -> (i32, i32) {
    %c0_i32 = arith.constant 0 : i32
    %c0_i32_0 = arith.constant 0 : i32
    %c0_i32_1 = arith.constant 0 : i32
    return %c0_i32, %c0_i32_0 : i32, i32
  }
  func.func @transform_2(%arg0: i32) -> (i32, i32) {
    %c0_i32 = arith.constant 0 : i32
    %c0_i32_0 = arith.constant 0 : i32
    %c0_i32_1 = arith.constant 0 : i32
    return %c0_i32, %c0_i32_0 : i32, i32
  }
  func.func @transform_3(%arg0: i32) -> (i32, i32) {
    %c0_i32 = arith.constant 0 : i32
    %c0_i32_0 = arith.constant 0 : i32
    %c0_i32_1 = arith.constant 0 : i32
    return %c0_i32, %c0_i32_0 : i32, i32
  }
  func.func @transform_4(%arg0: i32) -> (i32, i32) {
    %c0_i32 = arith.constant 0 : i32
    %c0_i32_0 = arith.constant 0 : i32
    %c0_i32_1 = arith.constant 0 : i32
    return %c0_i32, %c0_i32_0 : i32, i32
  }
  func.func @transform_5(%arg0: i32) -> (i32, i32) {
    %c0_i32 = arith.constant 0 : i32
    %c0_i32_0 = arith.constant 0 : i32
    %c0_i32_1 = arith.constant 0 : i32
    return %c0_i32, %c0_i32_0 : i32, i32
  }
  func.func @transform_6(%arg0: i32) -> (i32, i32) {
    %c0_i32 = arith.constant 0 : i32
    %c0_i32_0 = arith.constant 0 : i32
    %c0_i32_1 = arith.constant 0 : i32
    return %c0_i32, %c0_i32_0 : i32, i32
  }
  func.func @transform_7(%arg0: i32) -> (i32, i32) {
    %c0_i32 = arith.constant 0 : i32
    %c0_i32_0 = arith.constant 0 : i32
    %c0_i32_1 = arith.constant 0 : i32
    return %c0_i32, %c0_i32_0 : i32, i32
  }
  func.func @transform_8(%arg0: i32) -> (i32, i32) {
    %c0_i32 = arith.constant 0 : i32
    %c0_i32_0 = arith.constant 0 : i32
    %c0_i32_1 = arith.constant 0 : i32
    return %c0_i32, %c0_i32_0 : i32, i32
  }
  func.func @transform_9(%arg0: i32) -> (i32, i32) {
    %c0_i32 = arith.constant 0 : i32
    %c0_i32_0 = arith.constant 0 : i32
    %c0_i32_1 = arith.constant 0 : i32
    return %c0_i32, %c0_i32_0 : i32, i32
  }
  func.func @transform_10(%arg0: i32) -> (i32, i32) {
    %c0_i32 = arith.constant 0 : i32
    %c0_i32_0 = arith.constant 0 : i32
    %c0_i32_1 = arith.constant 0 : i32
    return %c0_i32, %c0_i32_0 : i32, i32
  }
  func.func @transform_11(%arg0: i32) -> (i32, i32) {
    %c0_i32 = arith.constant 0 : i32
    %c0_i32_0 = arith.constant 0 : i32
    return %arg0, %c0_i32 : i32, i32
  }
}

</mosaic_0001>

<llo_original>
// kernel: tpu_custom_call.1
$region0: #{tpu_custom_call.1}
  #allocation0 [shape = 'u32[]', space=smem, size = 0x4, offset = 0x4, fixed_abs, tag = 'smem constant byte address 0x4 - core index']
  #allocation1 [shape = 'u32[144,128]{1,0:T(1,128)}', space=vmem, size = 0x12000, scoped, tag = 'internal scratch']
  #allocation2 [shape = 'f32[1,1]{1,0:T(1,128)S(1)}', space=vmem, size = 0x200, scoped, tag = 'scoped memory for tpu_custom_call.1']
  %s0 = inlined_call_operand.vmem [shape: f32[512,8], index: 0, kind: input, shape index: {}]
  %s1 = inlined_call_operand.vmem [shape: f32[8,32], index: 1, kind: input, shape index: {}]
  %s2 = inlined_call_operand.vmem [shape: f32[1,32], index: 2, kind: input, shape index: {}]
  %s3 = inlined_call_operand.vmem [shape: f32[32,128], index: 3, kind: input, shape index: {}]
  %s4 = inlined_call_operand.vmem [shape: f32[1,128], index: 4, kind: input, shape index: {}]
  %s5 = inlined_call_operand.vmem [shape: f32[128,64], index: 5, kind: input, shape index: {}]
  %s6 = inlined_call_operand.vmem [shape: f32[1,64], index: 6, kind: input, shape index: {}]
  %s7 = inlined_call_operand.vmem [shape: f32[64,8], index: 7, kind: input, shape index: {}]
  %s8 = inlined_call_operand.vmem [shape: f32[1,8], index: 8, kind: input, shape index: {}]
  %s9 = inlined_call_operand.vmem [shape: f32[1,8], index: 9, kind: input, shape index: {}]
  %s10 = inlined_call_operand.<no memory space> [shape: f32[1,1], index: 10, kind: input, shape index: {}]
  %s11 = inlined_call_operand.vmem [shape: f32[512,1], index: 11, kind: output, shape index: {}]
  %s12 = sld [smem:[#allocation0]]
  $region77: #{tpu_custom_call.1} parent=0
    _
  %s14 = ssub.s32 1, %s12
  %s15 = scalar_select 0, %s14, %s12
  %v16 = vstv %s10
  %17 = vst [vmem:[#allocation2] sm:$0x1] %v16
  loop: start=0, step=1, limit=6
  $region2: #{tpu_custom_call.1} parent=0 // loop_pre_header
    _
  $region3: #{tpu_custom_call.1} parent=0 // loop_header
    %s19 = sphi 0, %s23
    %p20 = scmp.ge.s32.totalorder %s19, 6
    %s29 = sphi 0, %s31
    %s32 = sphi 0, %s29
    %s33 = sphi 0, %s32
    %s49 = sphi 0, %s33
    %s53 = sphi 0, %s53
    %s55 = sphi 0, %s53
    %s56 = sphi 0, %s55
    %s70 = sphi 0, %s56
    %s74 = sphi 0, %s74
    %s76 = sphi 0, %s74
    %s77 = sphi 0, %s76
    %s91 = sphi 0, %s77
    %s95 = sphi 0, %s95
    %s97 = sphi 0, %s95
    %s98 = sphi 0, %s97
    %s112 = sphi 0, %s98
    %s116 = sphi 0, %s116
    %s118 = sphi 0, %s116
    %s119 = sphi 0, %s118
    %s133 = sphi 0, %s119
    %s137 = sphi 0, %s137
    %s139 = sphi 0, %s137
    %s140 = sphi 0, %s139
    %s154 = sphi 0, %s140
    %s158 = sphi 0, %s158
    %s160 = sphi 0, %s158
    %s161 = sphi 0, %s160
    %s175 = sphi 0, %s161
    %s179 = sphi 0, %s179
    %s181 = sphi 0, %s179
    %s182 = sphi 0, %s181
    %s196 = sphi 0, %s182
    %s200 = sphi 0, %s200
    %s202 = sphi 0, %s200
    %s203 = sphi 0, %s202
    %s217 = sphi 0, %s203
    %s221 = sphi 0, %s221
    %s223 = sphi 0, %s221
    %s224 = sphi 0, %s223
    %s238 = sphi 0, %s224
    %s242 = sphi 0, %s242
    %s244 = sphi 0, %s242
    %s245 = sphi 0, %s244
    %s259 = sphi 0, %s245
    %s265 = sphi 0, %s267
    %s268 = sphi 0, %s265
    %s269 = sphi 0, %s268
    %s285 = sphi 0, %s269
  $region4: #{tpu_custom_call.1} parent=0 // loop_header_branch
    %22 = sbr.rel (%p20) target = $region8
  $region5: #{tpu_custom_call.1} parent=0 // loop_body
    %s24 = ssub.s32 %s19, 1
    %s25 = ssub.s32 %s19, 2
    %s26 = sadd.s32 %s19, 1
    %s27 = ssub.s32 %s19, %s26
    %p28 = scmp.eq.s32.totalorder %s27, 0
    %s30 = sadd.s32 %s29, 1
    %s31 = scalar_select %p28, %s29, %s30
    %p34 = pneg %p28
    %p35 = scmp.eq.s32.totalorder %s19, 3
    %p36 = por %p34, %p35
    %p37 = scmp.ne.s32.totalorder %s29, %s32
    %p38 = scmp.eq.s32.totalorder %s19, 0
    %p39 = por %p37, %p38
    %p40 = scmp.ne.s32.totalorder %s29, %s32
    %p41 = scmp.eq.s32.totalorder %s24, 3
    %p42 = por %p40, %p41
    %p43 = scmp.ne.s32.totalorder %s32, %s33
    %p44 = scmp.eq.s32.totalorder %s24, 0
    %p45 = por %p43, %p44
    %p46 = scmp.ne.s32.totalorder %s32, %s33
    %p47 = scmp.eq.s32.totalorder %s25, 3
    %p48 = por %p46, %p47
    %p50 = scmp.ne.s32.totalorder %s33, %s49
    %p51 = scmp.eq.s32.totalorder %s25, 0
    %p52 = por %p50, %p51
    %s54 = sadd.s32 %s53, 1
    %p57 = scmp.eq.s32.totalorder %s19, 3
    %p58 = scmp.ne.s32.totalorder %s53, %s55
    %p59 = scmp.eq.s32.totalorder %s19, 0
    %p60 = por %p58, %p59
    %p61 = scmp.ne.s32.totalorder %s53, %s55
    %p62 = scmp.eq.s32.totalorder %s24, 3
    %p63 = por %p61, %p62
    %p64 = scmp.ne.s32.totalorder %s55, %s56
    %p65 = scmp.eq.s32.totalorder %s24, 0
    %p66 = por %p64, %p65
    %p67 = scmp.ne.s32.totalorder %s55, %s56
    %p68 = scmp.eq.s32.totalorder %s25, 3
    %p69 = por %p67, %p68
    %p71 = scmp.ne.s32.totalorder %s56, %s70
    %p72 = scmp.eq.s32.totalorder %s25, 0
    %p73 = por %p71, %p72
    %s75 = sadd.s32 %s74, 1
    %p78 = scmp.eq.s32.totalorder %s19, 3
    %p79 = scmp.ne.s32.totalorder %s74, %s76
    %p80 = scmp.eq.s32.totalorder %s19, 0
    %p81 = por %p79, %p80
    %p82 = scmp.ne.s32.totalorder %s74, %s76
    %p83 = scmp.eq.s32.totalorder %s24, 3
    %p84 = por %p82, %p83
    %p85 = scmp.ne.s32.totalorder %s76, %s77
    %p86 = scmp.eq.s32.totalorder %s24, 0
    %p87 = por %p85, %p86
    %p88 = scmp.ne.s32.totalorder %s76, %s77
    %p89 = scmp.eq.s32.totalorder %s25, 3
    %p90 = por %p88, %p89
    %p92 = scmp.ne.s32.totalorder %s77, %s91
    %p93 = scmp.eq.s32.totalorder %s25, 0
    %p94 = por %p92, %p93
    %s96 = sadd.s32 %s95, 1
    %p99 = scmp.eq.s32.totalorder %s19, 3
    %p100 = scmp.ne.s32.totalorder %s95, %s97
    %p101 = scmp.eq.s32.totalorder %s19, 0
    %p102 = por %p100, %p101
    %p103 = scmp.ne.s32.totalorder %s95, %s97
    %p104 = scmp.eq.s32.totalorder %s24, 3
    %p105 = por %p103, %p104
    %p106 = scmp.ne.s32.totalorder %s97, %s98
    %p107 = scmp.eq.s32.totalorder %s24, 0
    %p108 = por %p106, %p107
    %p109 = scmp.ne.s32.totalorder %s97, %s98
    %p110 = scmp.eq.s32.totalorder %s25, 3
    %p111 = por %p109, %p110
    %p113 = scmp.ne.s32.totalorder %s98, %s112
    %p114 = scmp.eq.s32.totalorder %s25, 0
    %p115 = por %p113, %p114
    %s117 = sadd.s32 %s116, 1
    %p120 = scmp.eq.s32.totalorder %s19, 3
    %p121 = scmp.ne.s32.totalorder %s116, %s118
    %p122 = scmp.eq.s32.totalorder %s19, 0
    %p123 = por %p121, %p122
    %p124 = scmp.ne.s32.totalorder %s116, %s118
    %p125 = scmp.eq.s32.totalorder %s24, 3
    %p126 = por %p124, %p125
    %p127 = scmp.ne.s32.totalorder %s118, %s119
    %p128 = scmp.eq.s32.totalorder %s24, 0
    %p129 = por %p127, %p128
    %p130 = scmp.ne.s32.totalorder %s118, %s119
    %p131 = scmp.eq.s32.totalorder %s25, 3
    %p132 = por %p130, %p131
    %p134 = scmp.ne.s32.totalorder %s119, %s133
    %p135 = scmp.eq.s32.totalorder %s25, 0
    %p136 = por %p134, %p135
    %s138 = sadd.s32 %s137, 1
    %p141 = scmp.eq.s32.totalorder %s19, 3
    %p142 = scmp.ne.s32.totalorder %s137, %s139
    %p143 = scmp.eq.s32.totalorder %s19, 0
    %p144 = por %p142, %p143
    %p145 = scmp.ne.s32.totalorder %s137, %s139
    %p146 = scmp.eq.s32.totalorder %s24, 3
    %p147 = por %p145, %p146
    %p148 = scmp.ne.s32.totalorder %s139, %s140
    %p149 = scmp.eq.s32.totalorder %s24, 0
    %p150 = por %p148, %p149
    %p151 = scmp.ne.s32.totalorder %s139, %s140
    %p152 = scmp.eq.s32.totalorder %s25, 3
    %p153 = por %p151, %p152
    %p155 = scmp.ne.s32.totalorder %s140, %s154
    %p156 = scmp.eq.s32.totalorder %s25, 0
    %p157 = por %p155, %p156
    %s159 = sadd.s32 %s158, 1
    %p162 = scmp.eq.s32.totalorder %s19, 3
    %p163 = scmp.ne.s32.totalorder %s158, %s160
    %p164 = scmp.eq.s32.totalorder %s19, 0
    %p165 = por %p163, %p164
    %p166 = scmp.ne.s32.totalorder %s158, %s160
    %p167 = scmp.eq.s32.totalorder %s24, 3
    %p168 = por %p166, %p167
    %p169 = scmp.ne.s32.totalorder %s160, %s161
    %p170 = scmp.eq.s32.totalorder %s24, 0
    %p171 = por %p169, %p170
    %p172 = scmp.ne.s32.totalorder %s160, %s161
    %p173 = scmp.eq.s32.totalorder %s25, 3
    %p174 = por %p172, %p173
    %p176 = scmp.ne.s32.totalorder %s161, %s175
    %p177 = scmp.eq.s32.totalorder %s25, 0
    %p178 = por %p176, %p177
    %s180 = sadd.s32 %s179, 1
    %p183 = scmp.eq.s32.totalorder %s19, 3
    %p184 = scmp.ne.s32.totalorder %s179, %s181
    %p185 = scmp.eq.s32.totalorder %s19, 0
    %p186 = por %p184, %p185
    %p187 = scmp.ne.s32.totalorder %s179, %s181
    %p188 = scmp.eq.s32.totalorder %s24, 3
    %p189 = por %p187, %p188
    %p190 = scmp.ne.s32.totalorder %s181, %s182
    %p191 = scmp.eq.s32.totalorder %s24, 0
    %p192 = por %p190, %p191
    %p193 = scmp.ne.s32.totalorder %s181, %s182
    %p194 = scmp.eq.s32.totalorder %s25, 3
    %p195 = por %p193, %p194
    %p197 = scmp.ne.s32.totalorder %s182, %s196
    %p198 = scmp.eq.s32.totalorder %s25, 0
    %p199 = por %p197, %p198
    %s201 = sadd.s32 %s200, 1
    %p204 = scmp.eq.s32.totalorder %s19, 3
    %p205 = scmp.ne.s32.totalorder %s200, %s202
    %p206 = scmp.eq.s32.totalorder %s19, 0
    %p207 = por %p205, %p206
    %p208 = scmp.ne.s32.totalorder %s200, %s202
    %p209 = scmp.eq.s32.totalorder %s24, 3
    %p210 = por %p208, %p209
    %p211 = scmp.ne.s32.totalorder %s202, %s203
    %p212 = scmp.eq.s32.totalorder %s24, 0
    %p213 = por %p211, %p212
    %p214 = scmp.ne.s32.totalorder %s202, %s203
    %p215 = scmp.eq.s32.totalorder %s25, 3
    %p216 = por %p214, %p215
    %p218 = scmp.ne.s32.totalorder %s203, %s217
    %p219 = scmp.eq.s32.totalorder %s25, 0
    %p220 = por %p218, %p219
    %s222 = sadd.s32 %s221, 1
    %p225 = scmp.eq.s32.totalorder %s19, 3
    %p226 = scmp.ne.s32.totalorder %s221, %s223
    %p227 = scmp.eq.s32.totalorder %s19, 0
    %p228 = por %p226, %p227
    %p229 = scmp.ne.s32.totalorder %s221, %s223
    %p230 = scmp.eq.s32.totalorder %s24, 3
    %p231 = por %p229, %p230
    %p232 = scmp.ne.s32.totalorder %s223, %s224
    %p233 = scmp.eq.s32.totalorder %s24, 0
    %p234 = por %p232, %p233
    %p235 = scmp.ne.s32.totalorder %s223, %s224
    %p236 = scmp.eq.s32.totalorder %s25, 3
    %p237 = por %p235, %p236
    %p239 = scmp.ne.s32.totalorder %s224, %s238
    %p240 = scmp.eq.s32.totalorder %s25, 0
    %p241 = por %p239, %p240
    %s243 = sadd.s32 %s242, 1
    %p246 = scmp.eq.s32.totalorder %s19, 3
    %p247 = scmp.ne.s32.totalorder %s242, %s244
    %p248 = scmp.eq.s32.totalorder %s19, 0
    %p249 = por %p247, %p248
    %p250 = scmp.ne.s32.totalorder %s242, %s244
    %p251 = scmp.eq.s32.totalorder %s24, 3
    %p252 = por %p250, %p251
    %p253 = scmp.ne.s32.totalorder %s244, %s245
    %p254 = scmp.eq.s32.totalorder %s24, 0
    %p255 = por %p253, %p254
    %p256 = scmp.ne.s32.totalorder %s244, %s245
    %p257 = scmp.eq.s32.totalorder %s25, 3
    %p258 = por %p256, %p257
    %p260 = scmp.ne.s32.totalorder %s245, %s259
    %p261 = scmp.eq.s32.totalorder %s25, 0
    %p262 = por %p260, %p261
    %s263 = ssub.s32 %s19, %s26
    %p264 = scmp.eq.s32.totalorder %s263, 0
    %s266 = sadd.s32 %s265, 1
    %s267 = scalar_select %p264, %s265, %s266
    %p270 = pneg %p264
    %p271 = scmp.eq.s32.totalorder %s19, 3
    %p272 = por %p270, %p271
    %p273 = scmp.ne.s32.totalorder %s265, %s268
    %p274 = scmp.eq.s32.totalorder %s19, 0
    %p275 = por %p273, %p274
    %p276 = scmp.ne.s32.totalorder %s265, %s268
    %p277 = scmp.eq.s32.totalorder %s24, 3
    %p278 = por %p276, %p277
    %p279 = scmp.ne.s32.totalorder %s268, %s269
    %p280 = scmp.eq.s32.totalorder %s24, 0
    %p281 = por %p279, %p280
    %p282 = scmp.ne.s32.totalorder %s268, %s269
    %p283 = scmp.eq.s32.totalorder %s25, 3
    %p284 = por %p282, %p283
    %p286 = scmp.ne.s32.totalorder %s269, %s285
    %p287 = scmp.eq.s32.totalorder %s25, 0
    %p288 = por %p286, %p287
    %p289 = scmp.le.s32.totalorder 1, %s19
    %p290 = scmp.lt.s32.totalorder %s19, 5
    %p291 = pnand %p289, %p290
    %p292 = pneg %p291
    // Predicated region
    $region9: #{tpu_custom_call.1} parent=5 // pred_check
      _
    $region10: #{tpu_custom_call.1} parent=5 // pred_check_branch
      %294 = sbr.rel (%p291) target = $region12
    $region11: #{tpu_custom_call.1} parent=5 // pred_region
      %s295 = ssub.s32 %s19, 1
      // Predicated region
      $region13: #{tpu_custom_call.1} parent=11 // pred_check
        %p296 = pneg %p66
      $region14: #{tpu_custom_call.1} parent=11 // pred_check_branch
        %298 = sbr.rel (%p296) target = $region16
      $region15: #{tpu_custom_call.1} parent=11 // pred_region
        _
      $region16: #{tpu_custom_call.1} parent=11 // pred_fallthru
        _
      // Predicated region
      $region17: #{tpu_custom_call.1} parent=11 // pred_check
        %p299 = pneg %p87
      $region18: #{tpu_custom_call.1} parent=11 // pred_check_branch
        %301 = sbr.rel (%p299) target = $region20
      $region19: #{tpu_custom_call.1} parent=11 // pred_region
        _
      $region20: #{tpu_custom_call.1} parent=11 // pred_fallthru
        _
      // Predicated region
      $region21: #{tpu_custom_call.1} parent=11 // pred_check
        %p302 = pneg %p108
      $region22: #{tpu_custom_call.1} parent=11 // pred_check_branch
        %304 = sbr.rel (%p302) target = $region24
      $region23: #{tpu_custom_call.1} parent=11 // pred_region
        _
      $region24: #{tpu_custom_call.1} parent=11 // pred_fallthru
        _
      // Predicated region
      $region25: #{tpu_custom_call.1} parent=11 // pred_check
        %p305 = pneg %p129
      $region26: #{tpu_custom_call.1} parent=11 // pred_check_branch
        %307 = sbr.rel (%p305) target = $region28
      $region27: #{tpu_custom_call.1} parent=11 // pred_region
        _
      $region28: #{tpu_custom_call.1} parent=11 // pred_fallthru
        _
      // Predicated region
      $region29: #{tpu_custom_call.1} parent=11 // pred_check
        %p308 = pneg %p150
      $region30: #{tpu_custom_call.1} parent=11 // pred_check_branch
        %310 = sbr.rel (%p308) target = $region32
      $region31: #{tpu_custom_call.1} parent=11 // pred_region
        _
      $region32: #{tpu_custom_call.1} parent=11 // pred_fallthru
        _
      // Predicated region
      $region33: #{tpu_custom_call.1} parent=11 // pred_check
        %p311 = pneg %p171
      $region34: #{tpu_custom_call.1} parent=11 // pred_check_branch
        %313 = sbr.rel (%p311) target = $region36
      $region35: #{tpu_custom_call.1} parent=11 // pred_region
        _
      $region36: #{tpu_custom_call.1} parent=11 // pred_fallthru
        _
      // Predicated region
      $region37: #{tpu_custom_call.1} parent=11 // pred_check
        %p314 = pneg %p192
      $region38: #{tpu_custom_call.1} parent=11 // pred_check_branch
        %316 = sbr.rel (%p314) target = $region40
      $region39: #{tpu_custom_call.1} parent=11 // pred_region
        _
      $region40: #{tpu_custom_call.1} parent=11 // pred_fallthru
        _
      // Predicated region
      $region41: #{tpu_custom_call.1} parent=11 // pred_check
        %p317 = pneg %p213
      $region42: #{tpu_custom_call.1} parent=11 // pred_check_branch
        %319 = sbr.rel (%p317) target = $region44
      $region43: #{tpu_custom_call.1} parent=11 // pred_region
        _
      $region44: #{tpu_custom_call.1} parent=11 // pred_fallthru
        _
      // Predicated region
      $region45: #{tpu_custom_call.1} parent=11 // pred_check
        %p320 = pneg %p234
      $region46: #{tpu_custom_call.1} parent=11 // pred_check_branch
        %322 = sbr.rel (%p320) target = $region48
      $region47: #{tpu_custom_call.1} parent=11 // pred_region
        _
      $region48: #{tpu_custom_call.1} parent=11 // pred_fallthru
        _
      // Predicated region
      $region49: #{tpu_custom_call.1} parent=11 // pred_check
        %p323 = pneg %p255
      $region50: #{tpu_custom_call.1} parent=11 // pred_check_branch
        %325 = sbr.rel (%p323) target = $region52
      $region51: #{tpu_custom_call.1} parent=11 // pred_region
        _
      $region52: #{tpu_custom_call.1} parent=11 // pred_fallthru
        _
    $region12: #{tpu_custom_call.1} parent=5 // pred_fallthru
      _
    %p326 = scmp.lt.s32.totalorder %s19, 4
    // Predicated region
    $region53: #{tpu_custom_call.1} parent=5 // pred_check
      %p327 = pneg %p326
    $region54: #{tpu_custom_call.1} parent=5 // pred_check_branch
      %329 = sbr.rel (%p327) target = $region56
    $region55: #{tpu_custom_call.1} parent=5 // pred_region
      // Predicated region
      $region57: #{tpu_custom_call.1} parent=55 // pred_check
        %p330 = pneg %p39
      $region58: #{tpu_custom_call.1} parent=55 // pred_check_branch
        %332 = sbr.rel (%p330) target = $region60
      $region59: #{tpu_custom_call.1} parent=55 // pred_region
        %s333 = smul.u32 16, %s19
        %p334 = scmp.lt.s32.totalorder %s333, 63
        %s335 = scalar_select %p334, %s333, 63
        %s336 = smul.addr %s335, 8
        %s337 = scalar_lea.vmem %s0, %s336
        %s338 = smul.u32 16, %s19
      $region60: #{tpu_custom_call.1} parent=55 // pred_fallthru
        _
    $region56: #{tpu_custom_call.1} parent=5 // pred_fallthru
      _
    %p339 = scmp.le.s32.totalorder 1, %s19
    %p340 = scmp.lt.s32.totalorder %s19, 5
    %p341 = pnand %p339, %p340
    %p342 = pneg %p341
    // Predicated region
    $region61: #{tpu_custom_call.1} parent=5 // pred_check
      _
    $region62: #{tpu_custom_call.1} parent=5 // pred_check_branch
      %344 = sbr.rel (%p341) target = $region64
    $region63: #{tpu_custom_call.1} parent=5 // pred_region
      %s345 = ssub.s32 %s19, 1
      %s346 = smul.u32 16, %s24
      %p347 = scmp.lt.s32.totalorder %s346, 63
      %s348 = scalar_select %p347, %s346, 63
      %s349 = smul.addr %s348, 8
      %s350 = scalar_lea.vmem %s0, %s349
      %p351 = pneg %p45
      %p352 = pneg %p42
      %p353 = pneg %p66
      %p354 = pneg %p63
      %p355 = pneg %p87
      %p356 = pneg %p84
      %p357 = pneg %p108
      %p358 = pneg %p105
      %p359 = pneg %p129
      %p360 = pneg %p126
      %p361 = pneg %p150
      %p362 = pneg %p147
      %p363 = pneg %p171
      %p364 = pneg %p168
      %p365 = pneg %p192
      %p366 = pneg %p189
      %p367 = pneg %p213
      %p368 = pneg %p210
      %p369 = pneg %p234
      %p370 = pneg %p231
      %p371 = pneg %p255
      %p372 = pneg %p252
      %p373 = pneg %p281
      %p374 = pneg %p278
      %s375 = smul.u32 16, %s24
      %p376 = scmp.lt.s32.totalorder %s375, 63
      %s377 = scalar_select %p376, %s375, 63
      %s378 = smul.addr %s377, 8
      %s379 = scalar_lea.vmem %s11, %s378
      %s380 = smul.u32 16, %s24
      %p381 = scmp.lt.s32.totalorder %s380, 63
      %s382 = scalar_select %p381, %s380, 63
      %s383 = smul.addr %s382, 8
      %s384 = scalar_lea.vmem %s0, %s383
      %s385 = smul.u32 16, %s24
      %s386 = smul.u32 16, %s24
      %p387 = scmp.lt.s32.totalorder %s386, 63
      %s388 = scalar_select %p387, %s386, 63
      %s389 = smul.addr %s388, 8
      %s390 = scalar_lea.vmem %s11, %s389
      %s391 = smul.u32 16, %s24
      %v392 = vld [vmem:[%s384] sm:$0xff]
      %v393 = vld [vmem:[%s384 + $0x8] sm:$0xff]
      %v394 = vld [vmem:[%s384 + $0x10] sm:$0xff]
      %v395 = vld [vmem:[%s384 + $0x18] sm:$0xff]
      %v396 = vld [vmem:[%s384 + $0x20] sm:$0xff]
      %v397 = vld [vmem:[%s384 + $0x28] sm:$0xff]
      %v398 = vld [vmem:[%s384 + $0x30] sm:$0xff]
      %v399 = vld [vmem:[%s384 + $0x38] sm:$0xff]
      %v400 = vld [vmem:[%s384 + $0x40] sm:$0xff]
      %v401 = vld [vmem:[%s384 + $0x48] sm:$0xff]
      %v402 = vld [vmem:[%s384 + $0x50] sm:$0xff]
      %v403 = vld [vmem:[%s384 + $0x58] sm:$0xff]
      %v404 = vld [vmem:[%s384 + $0x60] sm:$0xff]
      %v405 = vld [vmem:[%s384 + $0x68] sm:$0xff]
      %v406 = vld [vmem:[%s384 + $0x70] sm:$0xff]
      %v407 = vld [vmem:[%s384 + $0x78] sm:$0xff]
      %v408 = vld [vmem:[%s2] sm:$0x1]
      %v409 = vld [vmem:[%s4] sm:$0x1]
      %v410 = vld [vmem:[%s6] sm:$0x1]
      %v411 = vld [vmem:[%s8] sm:$0x1]
      %v412 = vld [vmem:[#allocation2] sm:$0x1]
      %v413 = vld [vmem:[%s1] sm:$0xff]
      %v415 = vlaneseq
      %v416 = vshrl.u32 %v415, 7
      %v417 = vsub.s32 0, %v416
      %v418 = vrot.slane %v408, %v417
      %vm420 = vcmask 64512
      %v422 = vsel %vm420, %v392, 0
      %v425 = vsel %vm420, %v393, 0
      %v428 = vsel %vm420, %v394, 0
      %v431 = vsel %vm420, %v395, 0
      %v434 = vsel %vm420, %v396, 0
      %v437 = vsel %vm420, %v397, 0
      %v440 = vsel %vm420, %v398, 0
      %v443 = vsel %vm420, %v399, 0
      %v446 = vsel %vm420, %v400, 0
      %v449 = vsel %vm420, %v401, 0
      %v452 = vsel %vm420, %v402, 0
      %v455 = vsel %vm420, %v403, 0
      %v458 = vsel %vm420, %v404, 0
      %v461 = vsel %vm420, %v405, 0
      %v464 = vsel %vm420, %v406, 0
      %v467 = vsel %vm420, %v407, 0
      %469 = vmatprep.subr.mxu0 0.0
      %470 = vmatpush1.msra.mxu0 0.0
      %471 = vmatprep.subr.mxu0 0.0
      %472 = vmatpush1.msra.mxu0 0.0
      %473 = vmatprep.subr.mxu0 0.0
      %474 = vmatpush1.msra.mxu0 0.0
      %475 = vmatprep.subr.mxu0 0.0
      %476 = vmatpush1.msra.mxu0 0.0
      %477 = vmatprep.subr.mxu0 0.0
      %478 = vmatpush1.msra.mxu0 0.0
      %479 = vmatprep.subr.mxu0 0.0
      %480 = vmatpush1.msra.mxu0 0.0
      %481 = vmatprep.subr.mxu0 0.0
      %482 = vmatpush1.msra.mxu0 0.0
      %483 = vmatprep.subr.mxu0 0.0
      %484 = vmatpush1.msra.mxu0 0.0
      %485 = vmatprep.subr.mxu0 0.0
      %486 = vmatpush1.msra.mxu0 0.0
      %487 = vmatprep.subr.mxu0 0.0
      %488 = vmatpush1.msra.mxu0 0.0
      %489 = vmatprep.subr.mxu0 0.0
      %490 = vmatpush1.msra.mxu0 0.0
      %491 = vmatprep.subr.mxu0 0.0
      %492 = vmatpush1.msra.mxu0 0.0
      %493 = vmatprep.subr.mxu0 0.0
      %494 = vmatpush1.msra.mxu0 0.0
      %495 = vmatprep.subr.mxu0 0.0
      %496 = vmatpush1.msra.mxu0 0.0
      %497 = vmatprep.subr.mxu0 0.0
      %498 = vmatpush1.msra.mxu0 0.0
      %499 = vmatprep.subr.mxu0 0.0
      %500 = vmatpush1.msra.mxu0 %v413
      %501 = vmatprep.subr.mxu0 0.0
      %502 = vmatpush2.msra.mxu0 0.0
      %503 = vmatprep.subr.mxu0 0.0
      %504 = vmatpush2.msra.mxu0 0.0
      %505 = vmatprep.subr.mxu0 0.0
      %506 = vmatpush2.msra.mxu0 0.0
      %507 = vmatprep.subr.mxu0 0.0
      %508 = vmatpush2.msra.mxu0 0.0
      %509 = vmatprep.subr.mxu0 0.0
      %510 = vmatpush2.msra.mxu0 0.0
      %511 = vmatprep.subr.mxu0 0.0
      %512 = vmatpush2.msra.mxu0 0.0
      %513 = vmatprep.subr.mxu0 0.0
      %514 = vmatpush2.msra.mxu0 0.0
      %515 = vmatprep.subr.mxu0 0.0
      %516 = vmatpush2.msra.mxu0 0.0
      %517 = vmatprep.subr.mxu0 0.0
      %518 = vmatpush2.msra.mxu0 0.0
      %519 = vmatprep.subr.mxu0 0.0
      %520 = vmatpush2.msra.mxu0 0.0
      %521 = vmatprep.subr.mxu0 0.0
      %522 = vmatpush2.msra.mxu0 0.0
      %523 = vmatprep.subr.mxu0 0.0
      %524 = vmatpush2.msra.mxu0 0.0
      %525 = vmatprep.subr.mxu0 0.0
      %526 = vmatpush2.msra.mxu0 0.0
      %527 = vmatprep.subr.mxu0 0.0
      %528 = vmatpush2.msra.mxu0 0.0
      %529 = vmatprep.subr.mxu0 0.0
      %530 = vmatpush2.msra.mxu0 0.0
      %531 = vmatprep.subr.mxu0 0.0
      %532 = vmatpush2.msra.mxu0 0.0
      %533 = vmatprep.mubr.f32.mxu0 0.0
      %534 = vmatmul.mubr.f32.gmra.mxu0 %v422
      %v535 = vpop.f32.mrf.mxu0
      %v536 = vadd.f32 %v418, %v535
      %v537 = vpop.f32.mrf.mxu0
      %538 = vmatprep.mubr.f32.mxu0 0.0
      %539 = vmatmul.mubr.f32.gmra.mxu0 %v425
      %v540 = vpop.f32.mrf.mxu0
      %v541 = vadd.f32 %v418, %v540
      %v542 = vpop.f32.mrf.mxu0
      %543 = vmatprep.mubr.f32.mxu0 0.0
      %544 = vmatmul.mubr.f32.gmra.mxu0 %v428
      %v545 = vpop.f32.mrf.mxu0
      %v546 = vadd.f32 %v418, %v545
      %v547 = vpop.f32.mrf.mxu0
      %548 = vmatprep.mubr.f32.mxu0 0.0
      %549 = vmatmul.mubr.f32.gmra.mxu0 %v431
      %v550 = vpop.f32.mrf.mxu0
      %v551 = vadd.f32 %v418, %v550
      %v552 = vpop.f32.mrf.mxu0
      %553 = vmatprep.mubr.f32.mxu0 0.0
      %554 = vmatmul.mubr.f32.gmra.mxu0 %v434
      %v555 = vpop.f32.mrf.mxu0
      %v556 = vadd.f32 %v418, %v555
      %v557 = vpop.f32.mrf.mxu0
      %558 = vmatprep.mubr.f32.mxu0 0.0
      %559 = vmatmul.mubr.f32.gmra.mxu0 %v437
      %v560 = vpop.f32.mrf.mxu0
      %v561 = vadd.f32 %v418, %v560
      %v562 = vpop.f32.mrf.mxu0
      %563 = vmatprep.mubr.f32.mxu0 0.0
      %564 = vmatmul.mubr.f32.gmra.mxu0 %v440
      %v565 = vpop.f32.mrf.mxu0
      %v566 = vadd.f32 %v418, %v565
      %v567 = vpop.f32.mrf.mxu0
      %568 = vmatprep.mubr.f32.mxu0 0.0
      %569 = vmatmul.mubr.f32.gmra.mxu0 %v443
      %v570 = vpop.f32.mrf.mxu0
      %v571 = vadd.f32 %v418, %v570
      %v572 = vpop.f32.mrf.mxu0
      %573 = vmatprep.mubr.f32.mxu0 0.0
      %574 = vmatmul.mubr.f32.gmra.mxu0 %v446
      %v575 = vpop.f32.mrf.mxu0
      %v576 = vadd.f32 %v418, %v575
      %v577 = vpop.f32.mrf.mxu0
      %578 = vmatprep.mubr.f32.mxu0 0.0
      %579 = vmatmul.mubr.f32.gmra.mxu0 %v449
      %v580 = vpop.f32.mrf.mxu0
      %v581 = vadd.f32 %v418, %v580
      %v582 = vpop.f32.mrf.mxu0
      %583 = vmatprep.mubr.f32.mxu0 0.0
      %584 = vmatmul.mubr.f32.gmra.mxu0 %v452
      %v585 = vpop.f32.mrf.mxu0
      %v586 = vadd.f32 %v418, %v585
      %v587 = vpop.f32.mrf.mxu0
      %588 = vmatprep.mubr.f32.mxu0 0.0
      %589 = vmatmul.mubr.f32.gmra.mxu0 %v455
      %v590 = vpop.f32.mrf.mxu0
      %v591 = vadd.f32 %v418, %v590
      %v592 = vpop.f32.mrf.mxu0
      %593 = vmatprep.mubr.f32.mxu0 0.0
      %594 = vmatmul.mubr.f32.gmra.mxu0 %v458
      %v595 = vpop.f32.mrf.mxu0
      %v596 = vadd.f32 %v418, %v595
      %v597 = vpop.f32.mrf.mxu0
      %598 = vmatprep.mubr.f32.mxu0 0.0
      %599 = vmatmul.mubr.f32.gmra.mxu0 %v461
      %v600 = vpop.f32.mrf.mxu0
      %v601 = vadd.f32 %v418, %v600
      %v602 = vpop.f32.mrf.mxu0
      %603 = vmatprep.mubr.f32.mxu0 0.0
      %604 = vmatmul.mubr.f32.gmra.mxu0 %v464
      %v605 = vpop.f32.mrf.mxu0
      %v606 = vadd.f32 %v418, %v605
      %v607 = vpop.f32.mrf.mxu0
      %608 = vmatprep.mubr.f32.mxu0 0.0
      %609 = vmatmul.mubr.f32.gmra.mxu0 %v467
      %v610 = vpop.f32.mrf.mxu0
      %v611 = vadd.f32 %v418, %v610
      %v612 = vpop.f32.mrf.mxu0
      %613 = vdwg.mxu0
      %v614 = vmax.f32 %v536, 0.0
      %v615 = vmax.f32 %v541, 0.0
      %v616 = vmax.f32 %v546, 0.0
      %v617 = vmax.f32 %v551, 0.0
      %v618 = vmax.f32 %v556, 0.0
      %v619 = vmax.f32 %v561, 0.0
      %v620 = vmax.f32 %v566, 0.0
      %v621 = vmax.f32 %v571, 0.0
      %v622 = vmax.f32 %v576, 0.0
      %v623 = vmax.f32 %v581, 0.0
      %v624 = vmax.f32 %v586, 0.0
      %v625 = vmax.f32 %v591, 0.0
      %v626 = vmax.f32 %v596, 0.0
      %v627 = vmax.f32 %v601, 0.0
      %v628 = vmax.f32 %v606, 0.0
      %v629 = vmax.f32 %v611, 0.0
      %v630 = vld [vmem:[%s3] sm:$0xff]
      %v631 = vld [vmem:[%s3 + $0x8] sm:$0xff]
      %v632 = vld [vmem:[%s3 + $0x10] sm:$0xff]
      %v633 = vld [vmem:[%s3 + $0x18] sm:$0xff]
      %v635 = vlaneseq
      %v636 = vshrl.u32 %v635, 7
      %v637 = vsub.s32 0, %v636
      %v638 = vrot.slane %v409, %v637
      %vm640 = vcmask 261120
      %v642 = vsel %vm640, %v614, 0
      %v645 = vsel %vm640, %v615, 0
      %v648 = vsel %vm640, %v616, 0
      %v651 = vsel %vm640, %v617, 0
      %v654 = vsel %vm640, %v618, 0
      %v657 = vsel %vm640, %v619, 0
      %v660 = vsel %vm640, %v620, 0
      %v663 = vsel %vm640, %v621, 0
      %v666 = vsel %vm640, %v622, 0
      %v669 = vsel %vm640, %v623, 0
      %v672 = vsel %vm640, %v624, 0
      %v675 = vsel %vm640, %v625, 0
      %v678 = vsel %vm640, %v626, 0
      %v681 = vsel %vm640, %v627, 0
      %v684 = vsel %vm640, %v628, 0
      %v687 = vsel %vm640, %v629, 0
      %689 = vmatprep.subr.mxu0 0.0
      %690 = vmatpush1.msra.mxu0 0.0
      %691 = vmatprep.subr.mxu0 0.0
      %692 = vmatpush1.msra.mxu0 0.0
      %693 = vmatprep.subr.mxu0 0.0
      %694 = vmatpush1.msra.mxu0 0.0
      %695 = vmatprep.subr.mxu0 0.0
      %696 = vmatpush1.msra.mxu0 0.0
      %697 = vmatprep.subr.mxu0 0.0
      %698 = vmatpush1.msra.mxu0 0.0
      %699 = vmatprep.subr.mxu0 0.0
      %700 = vmatpush1.msra.mxu0 0.0
      %701 = vmatprep.subr.mxu0 0.0
      %702 = vmatpush1.msra.mxu0 0.0
      %703 = vmatprep.subr.mxu0 0.0
      %704 = vmatpush1.msra.mxu0 0.0
      %705 = vmatprep.subr.mxu0 0.0
      %706 = vmatpush1.msra.mxu0 0.0
      %707 = vmatprep.subr.mxu0 0.0
      %708 = vmatpush1.msra.mxu0 0.0
      %709 = vmatprep.subr.mxu0 0.0
      %710 = vmatpush1.msra.mxu0 0.0
      %711 = vmatprep.subr.mxu0 0.0
      %712 = vmatpush1.msra.mxu0 0.0
      %713 = vmatprep.subr.mxu0 0.0
      %714 = vmatpush1.msra.mxu0 %v633
      %715 = vmatprep.subr.mxu0 0.0
      %716 = vmatpush1.msra.mxu0 %v632
      %717 = vmatprep.subr.mxu0 0.0
      %718 = vmatpush1.msra.mxu0 %v631
      %719 = vmatprep.subr.mxu0 0.0
      %720 = vmatpush1.msra.mxu0 %v630
      %721 = vmatprep.subr.mxu0 0.0
      %722 = vmatpush2.msra.mxu0 0.0
      %723 = vmatprep.subr.mxu0 0.0
      %724 = vmatpush2.msra.mxu0 0.0
      %725 = vmatprep.subr.mxu0 0.0
      %726 = vmatpush2.msra.mxu0 0.0
      %727 = vmatprep.subr.mxu0 0.0
      %728 = vmatpush2.msra.mxu0 0.0
      %729 = vmatprep.subr.mxu0 0.0
      %730 = vmatpush2.msra.mxu0 0.0
      %731 = vmatprep.subr.mxu0 0.0
      %732 = vmatpush2.msra.mxu0 0.0
      %733 = vmatprep.subr.mxu0 0.0
      %734 = vmatpush2.msra.mxu0 0.0
      %735 = vmatprep.subr.mxu0 0.0
      %736 = vmatpush2.msra.mxu0 0.0
      %737 = vmatprep.subr.mxu0 0.0
      %738 = vmatpush2.msra.mxu0 0.0
      %739 = vmatprep.subr.mxu0 0.0
      %740 = vmatpush2.msra.mxu0 0.0
      %741 = vmatprep.subr.mxu0 0.0
      %742 = vmatpush2.msra.mxu0 0.0
      %743 = vmatprep.subr.mxu0 0.0
      %744 = vmatpush2.msra.mxu0 0.0
      %745 = vmatprep.subr.mxu0 0.0
      %746 = vmatpush2.msra.mxu0 0.0
      %747 = vmatprep.subr.mxu0 0.0
      %748 = vmatpush2.msra.mxu0 0.0
      %749 = vmatprep.subr.mxu0 0.0
      %750 = vmatpush2.msra.mxu0 0.0
      %751 = vmatprep.subr.mxu0 0.0
      %752 = vmatpush2.msra.mxu0 0.0
      %753 = vmatprep.mubr.f32.mxu0 0.0
      %754 = vmatmul.mubr.f32.gmra.mxu0 %v642
      %v755 = vpop.f32.mrf.mxu0
      %v756 = vadd.f32 %v638, %v755
      %v757 = vpop.f32.mrf.mxu0
      %758 = vmatprep.mubr.f32.mxu0 0.0
      %759 = vmatmul.mubr.f32.gmra.mxu0 %v645
      %v760 = vpop.f32.mrf.mxu0
      %v761 = vadd.f32 %v638, %v760
      %v762 = vpop.f32.mrf.mxu0
      %763 = vmatprep.mubr.f32.mxu0 0.0
      %764 = vmatmul.mubr.f32.gmra.mxu0 %v648
      %v765 = vpop.f32.mrf.mxu0
      %v766 = vadd.f32 %v638, %v765
      %v767 = vpop.f32.mrf.mxu0
      %768 = vmatprep.mubr.f32.mxu0 0.0
      %769 = vmatmul.mubr.f32.gmra.mxu0 %v651
      %v770 = vpop.f32.mrf.mxu0
      %v771 = vadd.f32 %v638, %v770
      %v772 = vpop.f32.mrf.mxu0
      %773 = vmatprep.mubr.f32.mxu0 0.0
      %774 = vmatmul.mubr.f32.gmra.mxu0 %v654
      %v775 = vpop.f32.mrf.mxu0
      %v776 = vadd.f32 %v638, %v775
      %v777 = vpop.f32.mrf.mxu0
      %778 = vmatprep.mubr.f32.mxu0 0.0
      %779 = vmatmul.mubr.f32.gmra.mxu0 %v657
      %v780 = vpop.f32.mrf.mxu0
      %v781 = vadd.f32 %v638, %v780
      %v782 = vpop.f32.mrf.mxu0
      %783 = vmatprep.mubr.f32.mxu0 0.0
      %784 = vmatmul.mubr.f32.gmra.mxu0 %v660
      %v785 = vpop.f32.mrf.mxu0
      %v786 = vadd.f32 %v638, %v785
      %v787 = vpop.f32.mrf.mxu0
      %788 = vmatprep.mubr.f32.mxu0 0.0
      %789 = vmatmul.mubr.f32.gmra.mxu0 %v663
      %v790 = vpop.f32.mrf.mxu0
      %v791 = vadd.f32 %v638, %v790
      %v792 = vpop.f32.mrf.mxu0
      %793 = vmatprep.mubr.f32.mxu0 0.0
      %794 = vmatmul.mubr.f32.gmra.mxu0 %v666
      %v795 = vpop.f32.mrf.mxu0
      %v796 = vadd.f32 %v638, %v795
      %v797 = vpop.f32.mrf.mxu0
      %798 = vmatprep.mubr.f32.mxu0 0.0
      %799 = vmatmul.mubr.f32.gmra.mxu0 %v669
      %v800 = vpop.f32.mrf.mxu0
      %v801 = vadd.f32 %v638, %v800
      %v802 = vpop.f32.mrf.mxu0
      %803 = vmatprep.mubr.f32.mxu0 0.0
      %804 = vmatmul.mubr.f32.gmra.mxu0 %v672
      %v805 = vpop.f32.mrf.mxu0
      %v806 = vadd.f32 %v638, %v805
      %v807 = vpop.f32.mrf.mxu0
      %808 = vmatprep.mubr.f32.mxu0 0.0
      %809 = vmatmul.mubr.f32.gmra.mxu0 %v675
      %v810 = vpop.f32.mrf.mxu0
      %v811 = vadd.f32 %v638, %v810
      %v812 = vpop.f32.mrf.mxu0
      %813 = vmatprep.mubr.f32.mxu0 0.0
      %814 = vmatmul.mubr.f32.gmra.mxu0 %v678
      %v815 = vpop.f32.mrf.mxu0
      %v816 = vadd.f32 %v638, %v815
      %v817 = vpop.f32.mrf.mxu0
      %818 = vmatprep.mubr.f32.mxu0 0.0
      %819 = vmatmul.mubr.f32.gmra.mxu0 %v681
      %v820 = vpop.f32.mrf.mxu0
      %v821 = vadd.f32 %v638, %v820
      %v822 = vpop.f32.mrf.mxu0
      %823 = vmatprep.mubr.f32.mxu0 0.0
      %824 = vmatmul.mubr.f32.gmra.mxu0 %v684
      %v825 = vpop.f32.mrf.mxu0
      %v826 = vadd.f32 %v638, %v825
      %v827 = vpop.f32.mrf.mxu0
      %828 = vmatprep.mubr.f32.mxu0 0.0
      %829 = vmatmul.mubr.f32.gmra.mxu0 %v687
      %v830 = vpop.f32.mrf.mxu0
      %v831 = vadd.f32 %v638, %v830
      %v832 = vpop.f32.mrf.mxu0
      %833 = vdwg.mxu0
      %v834 = vmax.f32 %v756, 0.0
      %v835 = vmax.f32 %v761, 0.0
      %v836 = vmax.f32 %v766, 0.0
      %v837 = vmax.f32 %v771, 0.0
      %v838 = vmax.f32 %v776, 0.0
      %v839 = vmax.f32 %v781, 0.0
      %v840 = vmax.f32 %v786, 0.0
      %v841 = vmax.f32 %v791, 0.0
      %v842 = vmax.f32 %v796, 0.0
      %v843 = vmax.f32 %v801, 0.0
      %v844 = vmax.f32 %v806, 0.0
      %v845 = vmax.f32 %v811, 0.0
      %v846 = vmax.f32 %v816, 0.0
      %v847 = vmax.f32 %v821, 0.0
      %v848 = vmax.f32 %v826, 0.0
      %v849 = vmax.f32 %v831, 0.0
      %v850 = vld [vmem:[%s5] sm:$0xff]
      %v851 = vld [vmem:[%s5 + $0x8] sm:$0xff]
      %v852 = vld [vmem:[%s5 + $0x10] sm:$0xff]
      %v853 = vld [vmem:[%s5 + $0x18] sm:$0xff]
      %v854 = vld [vmem:[%s5 + $0x20] sm:$0xff]
      %v855 = vld [vmem:[%s5 + $0x28] sm:$0xff]
      %v856 = vld [vmem:[%s5 + $0x30] sm:$0xff]
      %v857 = vld [vmem:[%s5 + $0x38] sm:$0xff]
      %v858 = vld [vmem:[%s5 + $0x40] sm:$0xff]
      %v859 = vld [vmem:[%s5 + $0x48] sm:$0xff]
      %v860 = vld [vmem:[%s5 + $0x50] sm:$0xff]
      %v861 = vld [vmem:[%s5 + $0x58] sm:$0xff]
      %v862 = vld [vmem:[%s5 + $0x60] sm:$0xff]
      %v863 = vld [vmem:[%s5 + $0x68] sm:$0xff]
      %v864 = vld [vmem:[%s5 + $0x70] sm:$0xff]
      %v865 = vld [vmem:[%s5 + $0x78] sm:$0xff]
      %v867 = vlaneseq
      %v868 = vshrl.u32 %v867, 7
      %v869 = vsub.s32 0, %v868
      %v870 = vrot.slane %v410, %v869
      %872 = vmatprep.subr.mxu0 0.0
      %873 = vmatpush1.msra.mxu0 %v865
      %874 = vmatprep.subr.mxu0 0.0
      %875 = vmatpush1.msra.mxu0 %v864
      %876 = vmatprep.subr.mxu0 0.0
      %877 = vmatpush1.msra.mxu0 %v863
      %878 = vmatprep.subr.mxu0 0.0
      %879 = vmatpush1.msra.mxu0 %v862
      %880 = vmatprep.subr.mxu0 0.0
      %881 = vmatpush1.msra.mxu0 %v861
      %882 = vmatprep.subr.mxu0 0.0
      %883 = vmatpush1.msra.mxu0 %v860
      %884 = vmatprep.subr.mxu0 0.0
      %885 = vmatpush1.msra.mxu0 %v859
      %886 = vmatprep.subr.mxu0 0.0
      %887 = vmatpush1.msra.mxu0 %v858
      %888 = vmatprep.subr.mxu0 0.0
      %889 = vmatpush1.msra.mxu0 %v857
      %890 = vmatprep.subr.mxu0 0.0
      %891 = vmatpush1.msra.mxu0 %v856
      %892 = vmatprep.subr.mxu0 0.0
      %893 = vmatpush1.msra.mxu0 %v855
      %894 = vmatprep.subr.mxu0 0.0
      %895 = vmatpush1.msra.mxu0 %v854
      %896 = vmatprep.subr.mxu0 0.0
      %897 = vmatpush1.msra.mxu0 %v853
      %898 = vmatprep.subr.mxu0 0.0
      %899 = vmatpush1.msra.mxu0 %v852
      %900 = vmatprep.subr.mxu0 0.0
      %901 = vmatpush1.msra.mxu0 %v851
      %902 = vmatprep.subr.mxu0 0.0
      %903 = vmatpush1.msra.mxu0 %v850
      %904 = vmatprep.subr.mxu0 0.0
      %905 = vmatpush2.msra.mxu0 0.0
      %906 = vmatprep.subr.mxu0 0.0
      %907 = vmatpush2.msra.mxu0 0.0
      %908 = vmatprep.subr.mxu0 0.0
      %909 = vmatpush2.msra.mxu0 0.0
      %910 = vmatprep.subr.mxu0 0.0
      %911 = vmatpush2.msra.mxu0 0.0
      %912 = vmatprep.subr.mxu0 0.0
      %913 = vmatpush2.msra.mxu0 0.0
      %914 = vmatprep.subr.mxu0 0.0
      %915 = vmatpush2.msra.mxu0 0.0
      %916 = vmatprep.subr.mxu0 0.0
      %917 = vmatpush2.msra.mxu0 0.0
      %918 = vmatprep.subr.mxu0 0.0
      %919 = vmatpush2.msra.mxu0 0.0
      %920 = vmatprep.subr.mxu0 0.0
      %921 = vmatpush2.msra.mxu0 0.0
      %922 = vmatprep.subr.mxu0 0.0
      %923 = vmatpush2.msra.mxu0 0.0
      %924 = vmatprep.subr.mxu0 0.0
      %925 = vmatpush2.msra.mxu0 0.0
      %926 = vmatprep.subr.mxu0 0.0
      %927 = vmatpush2.msra.mxu0 0.0
      %928 = vmatprep.subr.mxu0 0.0
      %929 = vmatpush2.msra.mxu0 0.0
      %930 = vmatprep.subr.mxu0 0.0
      %931 = vmatpush2.msra.mxu0 0.0
      %932 = vmatprep.subr.mxu0 0.0
      %933 = vmatpush2.msra.mxu0 0.0
      %934 = vmatprep.subr.mxu0 0.0
      %935 = vmatpush2.msra.mxu0 0.0
      %936 = vmatprep.mubr.f32.mxu0 0.0
      %937 = vmatmul.mubr.f32.gmra.mxu0 %v834
      %v938 = vpop.f32.mrf.mxu0
      %v939 = vadd.f32 %v870, %v938
      %v940 = vpop.f32.mrf.mxu0
      %941 = vmatprep.mubr.f32.mxu0 0.0
      %942 = vmatmul.mubr.f32.gmra.mxu0 %v835
      %v943 = vpop.f32.mrf.mxu0
      %v944 = vadd.f32 %v870, %v943
      %v945 = vpop.f32.mrf.mxu0
      %946 = vmatprep.mubr.f32.mxu0 0.0
      %947 = vmatmul.mubr.f32.gmra.mxu0 %v836
      %v948 = vpop.f32.mrf.mxu0
      %v949 = vadd.f32 %v870, %v948
      %v950 = vpop.f32.mrf.mxu0
      %951 = vmatprep.mubr.f32.mxu0 0.0
      %952 = vmatmul.mubr.f32.gmra.mxu0 %v837
      %v953 = vpop.f32.mrf.mxu0
      %v954 = vadd.f32 %v870, %v953
      %v955 = vpop.f32.mrf.mxu0
      %956 = vmatprep.mubr.f32.mxu0 0.0
      %957 = vmatmul.mubr.f32.gmra.mxu0 %v838
      %v958 = vpop.f32.mrf.mxu0
      %v959 = vadd.f32 %v870, %v958
      %v960 = vpop.f32.mrf.mxu0
      %961 = vmatprep.mubr.f32.mxu0 0.0
      %962 = vmatmul.mubr.f32.gmra.mxu0 %v839
      %v963 = vpop.f32.mrf.mxu0
      %v964 = vadd.f32 %v870, %v963
      %v965 = vpop.f32.mrf.mxu0
      %966 = vmatprep.mubr.f32.mxu0 0.0
      %967 = vmatmul.mubr.f32.gmra.mxu0 %v840
      %v968 = vpop.f32.mrf.mxu0
      %v969 = vadd.f32 %v870, %v968
      %v970 = vpop.f32.mrf.mxu0
      %971 = vmatprep.mubr.f32.mxu0 0.0
      %972 = vmatmul.mubr.f32.gmra.mxu0 %v841
      %v973 = vpop.f32.mrf.mxu0
      %v974 = vadd.f32 %v870, %v973
      %v975 = vpop.f32.mrf.mxu0
      %976 = vmatprep.mubr.f32.mxu0 0.0
      %977 = vmatmul.mubr.f32.gmra.mxu0 %v842
      %v978 = vpop.f32.mrf.mxu0
      %v979 = vadd.f32 %v870, %v978
      %v980 = vpop.f32.mrf.mxu0
      %981 = vmatprep.mubr.f32.mxu0 0.0
      %982 = vmatmul.mubr.f32.gmra.mxu0 %v843
      %v983 = vpop.f32.mrf.mxu0
      %v984 = vadd.f32 %v870, %v983
      %v985 = vpop.f32.mrf.mxu0
      %986 = vmatprep.mubr.f32.mxu0 0.0
      %987 = vmatmul.mubr.f32.gmra.mxu0 %v844
      %v988 = vpop.f32.mrf.mxu0
      %v989 = vadd.f32 %v870, %v988
      %v990 = vpop.f32.mrf.mxu0
      %991 = vmatprep.mubr.f32.mxu0 0.0
      %992 = vmatmul.mubr.f32.gmra.mxu0 %v845
      %v993 = vpop.f32.mrf.mxu0
      %v994 = vadd.f32 %v870, %v993
      %v995 = vpop.f32.mrf.mxu0
      %996 = vmatprep.mubr.f32.mxu0 0.0
      %997 = vmatmul.mubr.f32.gmra.mxu0 %v846
      %v998 = vpop.f32.mrf.mxu0
      %v999 = vadd.f32 %v870, %v998
      %v1000 = vpop.f32.mrf.mxu0
      %1001 = vmatprep.mubr.f32.mxu0 0.0
      %1002 = vmatmul.mubr.f32.gmra.mxu0 %v847
      %v1003 = vpop.f32.mrf.mxu0
      %v1004 = vadd.f32 %v870, %v1003
      %v1005 = vpop.f32.mrf.mxu0
      %1006 = vmatprep.mubr.f32.mxu0 0.0
      %1007 = vmatmul.mubr.f32.gmra.mxu0 %v848
      %v1008 = vpop.f32.mrf.mxu0
      %v1009 = vadd.f32 %v870, %v1008
      %v1010 = vpop.f32.mrf.mxu0
      %1011 = vmatprep.mubr.f32.mxu0 0.0
      %1012 = vmatmul.mubr.f32.gmra.mxu0 %v849
      %v1013 = vpop.f32.mrf.mxu0
      %v1014 = vadd.f32 %v870, %v1013
      %v1015 = vpop.f32.mrf.mxu0
      %1016 = vdwg.mxu0
      %v1017 = vmax.f32 %v939, 0.0
      %v1018 = vmax.f32 %v944, 0.0
      %v1019 = vmax.f32 %v949, 0.0
      %v1020 = vmax.f32 %v954, 0.0
      %v1021 = vmax.f32 %v959, 0.0
      %v1022 = vmax.f32 %v964, 0.0
      %v1023 = vmax.f32 %v969, 0.0
      %v1024 = vmax.f32 %v974, 0.0
      %v1025 = vmax.f32 %v979, 0.0
      %v1026 = vmax.f32 %v984, 0.0
      %v1027 = vmax.f32 %v989, 0.0
      %v1028 = vmax.f32 %v994, 0.0
      %v1029 = vmax.f32 %v999, 0.0
      %v1030 = vmax.f32 %v1004, 0.0
      %v1031 = vmax.f32 %v1009, 0.0
      %v1032 = vmax.f32 %v1014, 0.0
      %v1033 = vld [vmem:[%s7] sm:$0xff]
      %v1034 = vld [vmem:[%s7 + $0x8] sm:$0xff]
      %v1035 = vld [vmem:[%s7 + $0x10] sm:$0xff]
      %v1036 = vld [vmem:[%s7 + $0x18] sm:$0xff]
      %v1037 = vld [vmem:[%s7 + $0x20] sm:$0xff]
      %v1038 = vld [vmem:[%s7 + $0x28] sm:$0xff]
      %v1039 = vld [vmem:[%s7 + $0x30] sm:$0xff]
      %v1040 = vld [vmem:[%s7 + $0x38] sm:$0xff]
      %v1042 = vlaneseq
      %v1043 = vshrl.u32 %v1042, 7
      %v1044 = vsub.s32 0, %v1043
      %v1045 = vrot.slane %v411, %v1044
      %vm1047 = vcmask 523264
      %v1049 = vsel %vm1047, %v1017, 0
      %v1052 = vsel %vm1047, %v1018, 0
      %v1055 = vsel %vm1047, %v1019, 0
      %v1058 = vsel %vm1047, %v1020, 0
      %v1061 = vsel %vm1047, %v1021, 0
      %v1064 = vsel %vm1047, %v1022, 0
      %v1067 = vsel %vm1047, %v1023, 0
      %v1070 = vsel %vm1047, %v1024, 0
      %v1073 = vsel %vm1047, %v1025, 0
      %v1076 = vsel %vm1047, %v1026, 0
      %v1079 = vsel %vm1047, %v1027, 0
      %v1082 = vsel %vm1047, %v1028, 0
      %v1085 = vsel %vm1047, %v1029, 0
      %v1088 = vsel %vm1047, %v1030, 0
      %v1091 = vsel %vm1047, %v1031, 0
      %v1094 = vsel %vm1047, %v1032, 0
      %1096 = vmatprep.subr.mxu0 0.0
      %1097 = vmatpush1.msra.mxu0 0.0
      %1098 = vmatprep.subr.mxu0 0.0
      %1099 = vmatpush1.msra.mxu0 0.0
      %1100 = vmatprep.subr.mxu0 0.0
      %1101 = vmatpush1.msra.mxu0 0.0
      %1102 = vmatprep.subr.mxu0 0.0
      %1103 = vmatpush1.msra.mxu0 0.0
      %1104 = vmatprep.subr.mxu0 0.0
      %1105 = vmatpush1.msra.mxu0 0.0
      %1106 = vmatprep.subr.mxu0 0.0
      %1107 = vmatpush1.msra.mxu0 0.0
      %1108 = vmatprep.subr.mxu0 0.0
      %1109 = vmatpush1.msra.mxu0 0.0
      %1110 = vmatprep.subr.mxu0 0.0
      %1111 = vmatpush1.msra.mxu0 0.0
      %1112 = vmatprep.subr.mxu0 0.0
      %1113 = vmatpush1.msra.mxu0 %v1040
      %1114 = vmatprep.subr.mxu0 0.0
      %1115 = vmatpush1.msra.mxu0 %v1039
      %1116 = vmatprep.subr.mxu0 0.0
      %1117 = vmatpush1.msra.mxu0 %v1038
      %1118 = vmatprep.subr.mxu0 0.0
      %1119 = vmatpush1.msra.mxu0 %v1037
      %1120 = vmatprep.subr.mxu0 0.0
      %1121 = vmatpush1.msra.mxu0 %v1036
      %1122 = vmatprep.subr.mxu0 0.0
      %1123 = vmatpush1.msra.mxu0 %v1035
      %1124 = vmatprep.subr.mxu0 0.0
      %1125 = vmatpush1.msra.mxu0 %v1034
      %1126 = vmatprep.subr.mxu0 0.0
      %1127 = vmatpush1.msra.mxu0 %v1033
      %1128 = vmatprep.subr.mxu0 0.0
      %1129 = vmatpush2.msra.mxu0 0.0
      %1130 = vmatprep.subr.mxu0 0.0
      %1131 = vmatpush2.msra.mxu0 0.0
      %1132 = vmatprep.subr.mxu0 0.0
      %1133 = vmatpush2.msra.mxu0 0.0
      %1134 = vmatprep.subr.mxu0 0.0
      %1135 = vmatpush2.msra.mxu0 0.0
      %1136 = vmatprep.subr.mxu0 0.0
      %1137 = vmatpush2.msra.mxu0 0.0
      %1138 = vmatprep.subr.mxu0 0.0
      %1139 = vmatpush2.msra.mxu0 0.0
      %1140 = vmatprep.subr.mxu0 0.0
      %1141 = vmatpush2.msra.mxu0 0.0
      %1142 = vmatprep.subr.mxu0 0.0
      %1143 = vmatpush2.msra.mxu0 0.0
      %1144 = vmatprep.subr.mxu0 0.0
      %1145 = vmatpush2.msra.mxu0 0.0
      %1146 = vmatprep.subr.mxu0 0.0
      %1147 = vmatpush2.msra.mxu0 0.0
      %1148 = vmatprep.subr.mxu0 0.0
      %1149 = vmatpush2.msra.mxu0 0.0
      %1150 = vmatprep.subr.mxu0 0.0
      %1151 = vmatpush2.msra.mxu0 0.0
      %1152 = vmatprep.subr.mxu0 0.0
      %1153 = vmatpush2.msra.mxu0 0.0
      %1154 = vmatprep.subr.mxu0 0.0
      %1155 = vmatpush2.msra.mxu0 0.0
      %1156 = vmatprep.subr.mxu0 0.0
      %1157 = vmatpush2.msra.mxu0 0.0
      %1158 = vmatprep.subr.mxu0 0.0
      %1159 = vmatpush2.msra.mxu0 0.0
      %1160 = vmatprep.mubr.f32.mxu0 0.0
      %1161 = vmatmul.mubr.f32.gmra.mxu0 %v1049
      %v1162 = vpop.f32.mrf.mxu0
      %v1163 = vadd.f32 %v1045, %v1162
      %v1164 = vpop.f32.mrf.mxu0
      %1165 = vmatprep.mubr.f32.mxu0 0.0
      %1166 = vmatmul.mubr.f32.gmra.mxu0 %v1052
      %v1167 = vpop.f32.mrf.mxu0
      %v1168 = vadd.f32 %v1045, %v1167
      %v1169 = vpop.f32.mrf.mxu0
      %1170 = vmatprep.mubr.f32.mxu0 0.0
      %1171 = vmatmul.mubr.f32.gmra.mxu0 %v1055
      %v1172 = vpop.f32.mrf.mxu0
      %v1173 = vadd.f32 %v1045, %v1172
      %v1174 = vpop.f32.mrf.mxu0
      %1175 = vmatprep.mubr.f32.mxu0 0.0
      %1176 = vmatmul.mubr.f32.gmra.mxu0 %v1058
      %v1177 = vpop.f32.mrf.mxu0
      %v1178 = vadd.f32 %v1045, %v1177
      %v1179 = vpop.f32.mrf.mxu0
      %1180 = vmatprep.mubr.f32.mxu0 0.0
      %1181 = vmatmul.mubr.f32.gmra.mxu0 %v1061
      %v1182 = vpop.f32.mrf.mxu0
      %v1183 = vadd.f32 %v1045, %v1182
      %v1184 = vpop.f32.mrf.mxu0
      %1185 = vmatprep.mubr.f32.mxu0 0.0
      %1186 = vmatmul.mubr.f32.gmra.mxu0 %v1064
      %v1187 = vpop.f32.mrf.mxu0
      %v1188 = vadd.f32 %v1045, %v1187
      %v1189 = vpop.f32.mrf.mxu0
      %1190 = vmatprep.mubr.f32.mxu0 0.0
      %1191 = vmatmul.mubr.f32.gmra.mxu0 %v1067
      %v1192 = vpop.f32.mrf.mxu0
      %v1193 = vadd.f32 %v1045, %v1192
      %v1194 = vpop.f32.mrf.mxu0
      %1195 = vmatprep.mubr.f32.mxu0 0.0
      %1196 = vmatmul.mubr.f32.gmra.mxu0 %v1070
      %v1197 = vpop.f32.mrf.mxu0
      %v1198 = vadd.f32 %v1045, %v1197
      %v1199 = vpop.f32.mrf.mxu0
      %1200 = vmatprep.mubr.f32.mxu0 0.0
      %1201 = vmatmul.mubr.f32.gmra.mxu0 %v1073
      %v1202 = vpop.f32.mrf.mxu0
      %v1203 = vadd.f32 %v1045, %v1202
      %v1204 = vpop.f32.mrf.mxu0
      %1205 = vmatprep.mubr.f32.mxu0 0.0
      %1206 = vmatmul.mubr.f32.gmra.mxu0 %v1076
      %v1207 = vpop.f32.mrf.mxu0
      %v1208 = vadd.f32 %v1045, %v1207
      %v1209 = vpop.f32.mrf.mxu0
      %1210 = vmatprep.mubr.f32.mxu0 0.0
      %1211 = vmatmul.mubr.f32.gmra.mxu0 %v1079
      %v1212 = vpop.f32.mrf.mxu0
      %v1213 = vadd.f32 %v1045, %v1212
      %v1214 = vpop.f32.mrf.mxu0
      %1215 = vmatprep.mubr.f32.mxu0 0.0
      %1216 = vmatmul.mubr.f32.gmra.mxu0 %v1082
      %v1217 = vpop.f32.mrf.mxu0
      %v1218 = vadd.f32 %v1045, %v1217
      %v1219 = vpop.f32.mrf.mxu0
      %1220 = vmatprep.mubr.f32.mxu0 0.0
      %1221 = vmatmul.mubr.f32.gmra.mxu0 %v1085
      %v1222 = vpop.f32.mrf.mxu0
      %v1223 = vadd.f32 %v1045, %v1222
      %v1224 = vpop.f32.mrf.mxu0
      %1225 = vmatprep.mubr.f32.mxu0 0.0
      %1226 = vmatmul.mubr.f32.gmra.mxu0 %v1088
      %v1227 = vpop.f32.mrf.mxu0
      %v1228 = vadd.f32 %v1045, %v1227
      %v1229 = vpop.f32.mrf.mxu0
      %1230 = vmatprep.mubr.f32.mxu0 0.0
      %1231 = vmatmul.mubr.f32.gmra.mxu0 %v1091
      %v1232 = vpop.f32.mrf.mxu0
      %v1233 = vadd.f32 %v1045, %v1232
      %v1234 = vpop.f32.mrf.mxu0
      %1235 = vmatprep.mubr.f32.mxu0 0.0
      %1236 = vmatmul.mubr.f32.gmra.mxu0 %v1094
      %v1237 = vpop.f32.mrf.mxu0
      %v1238 = vadd.f32 %v1045, %v1237
      %v1239 = vpop.f32.mrf.mxu0
      %1240 = vdwg.mxu0
      %v1241 = vmax.f32 %v1163, 0.0
      %v1242 = vmax.f32 %v1168, 0.0
      %v1243 = vmax.f32 %v1173, 0.0
      %v1244 = vmax.f32 %v1178, 0.0
      %v1245 = vmax.f32 %v1183, 0.0
      %v1246 = vmax.f32 %v1188, 0.0
      %v1247 = vmax.f32 %v1193, 0.0
      %v1248 = vmax.f32 %v1198, 0.0
      %v1249 = vmax.f32 %v1203, 0.0
      %v1250 = vmax.f32 %v1208, 0.0
      %v1251 = vmax.f32 %v1213, 0.0
      %v1252 = vmax.f32 %v1218, 0.0
      %v1253 = vmax.f32 %v1223, 0.0
      %v1254 = vmax.f32 %v1228, 0.0
      %v1255 = vmax.f32 %v1233, 0.0
      %v1256 = vmax.f32 %v1238, 0.0
      %v1257 = vld [vmem:[%s9] sm:$0x1]
      %v1259 = vlaneseq
      %v1260 = vshrl.u32 %v1259, 7
      %v1261 = vsub.s32 0, %v1260
      %v1262 = vrot.slane %v1257, %v1261
      %v1264 = vmul.f32 %v1241, %v1262
      %v1265 = vmul.f32 %v1242, %v1262
      %v1266 = vmul.f32 %v1243, %v1262
      %v1267 = vmul.f32 %v1244, %v1262
      %v1268 = vmul.f32 %v1245, %v1262
      %v1269 = vmul.f32 %v1246, %v1262
      %v1270 = vmul.f32 %v1247, %v1262
      %v1271 = vmul.f32 %v1248, %v1262
      %v1272 = vmul.f32 %v1249, %v1262
      %v1273 = vmul.f32 %v1250, %v1262
      %v1274 = vmul.f32 %v1251, %v1262
      %v1275 = vmul.f32 %v1252, %v1262
      %v1276 = vmul.f32 %v1253, %v1262
      %v1277 = vmul.f32 %v1254, %v1262
      %v1278 = vmul.f32 %v1255, %v1262
      %v1279 = vmul.f32 %v1256, %v1262
      %v1280 = vsel %vm420, %v1264, 0.0
      %1281 = vadd.xlane.f32.xlu0 %v1280
      %v1282 = vpop.xlane.xlu0 %1281
      %v1283 = vsel %vm420, %v1265, 0.0
      %1284 = vadd.xlane.f32.xlu0 %v1283
      %v1285 = vpop.xlane.xlu0 %1284
      %v1286 = vsel %vm420, %v1266, 0.0
      %1287 = vadd.xlane.f32.xlu0 %v1286
      %v1288 = vpop.xlane.xlu0 %1287
      %v1289 = vsel %vm420, %v1267, 0.0
      %1290 = vadd.xlane.f32.xlu0 %v1289
      %v1291 = vpop.xlane.xlu0 %1290
      %v1292 = vsel %vm420, %v1268, 0.0
      %1293 = vadd.xlane.f32.xlu0 %v1292
      %v1294 = vpop.xlane.xlu0 %1293
      %v1295 = vsel %vm420, %v1269, 0.0
      %1296 = vadd.xlane.f32.xlu0 %v1295
      %v1297 = vpop.xlane.xlu0 %1296
      %v1298 = vsel %vm420, %v1270, 0.0
      %1299 = vadd.xlane.f32.xlu0 %v1298
      %v1300 = vpop.xlane.xlu0 %1299
      %v1301 = vsel %vm420, %v1271, 0.0
      %1302 = vadd.xlane.f32.xlu0 %v1301
      %v1303 = vpop.xlane.xlu0 %1302
      %v1304 = vsel %vm420, %v1272, 0.0
      %1305 = vadd.xlane.f32.xlu0 %v1304
      %v1306 = vpop.xlane.xlu0 %1305
      %v1307 = vsel %vm420, %v1273, 0.0
      %1308 = vadd.xlane.f32.xlu0 %v1307
      %v1309 = vpop.xlane.xlu0 %1308
      %v1310 = vsel %vm420, %v1274, 0.0
      %1311 = vadd.xlane.f32.xlu0 %v1310
      %v1312 = vpop.xlane.xlu0 %1311
      %v1313 = vsel %vm420, %v1275, 0.0
      %1314 = vadd.xlane.f32.xlu0 %v1313
      %v1315 = vpop.xlane.xlu0 %1314
      %v1316 = vsel %vm420, %v1276, 0.0
      %1317 = vadd.xlane.f32.xlu0 %v1316
      %v1318 = vpop.xlane.xlu0 %1317
      %v1319 = vsel %vm420, %v1277, 0.0
      %1320 = vadd.xlane.f32.xlu0 %v1319
      %v1321 = vpop.xlane.xlu0 %1320
      %v1322 = vsel %vm420, %v1278, 0.0
      %1323 = vadd.xlane.f32.xlu0 %v1322
      %v1324 = vpop.xlane.xlu0 %1323
      %v1325 = vsel %vm420, %v1279, 0.0
      %1326 = vadd.xlane.f32.xlu0 %v1325
      %v1327 = vpop.xlane.xlu0 %1326
      %v1329 = vlaneseq
      %v1330 = vshrl.u32 %v1329, 7
      %v1331 = vsub.s32 0, %v1330
      %v1332 = vrot.slane %v412, %v1331
      %v1334 = vadd.f32 %v1282, %v1332
      %v1335 = vadd.f32 %v1285, %v1332
      %v1336 = vadd.f32 %v1288, %v1332
      %v1337 = vadd.f32 %v1291, %v1332
      %v1338 = vadd.f32 %v1294, %v1332
      %v1339 = vadd.f32 %v1297, %v1332
      %v1340 = vadd.f32 %v1300, %v1332
      %v1341 = vadd.f32 %v1303, %v1332
      %v1342 = vadd.f32 %v1306, %v1332
      %v1343 = vadd.f32 %v1309, %v1332
      %v1344 = vadd.f32 %v1312, %v1332
      %v1345 = vadd.f32 %v1315, %v1332
      %v1346 = vadd.f32 %v1318, %v1332
      %v1347 = vadd.f32 %v1321, %v1332
      %v1348 = vadd.f32 %v1324, %v1332
      %v1349 = vadd.f32 %v1327, %v1332
      %v1350 = vxor.u32 %v1334, 2147483648
      %v1351 = vxor.u32 %v1335, 2147483648
      %v1352 = vxor.u32 %v1336, 2147483648
      %v1353 = vxor.u32 %v1337, 2147483648
      %v1354 = vxor.u32 %v1338, 2147483648
      %v1355 = vxor.u32 %v1339, 2147483648
      %v1356 = vxor.u32 %v1340, 2147483648
      %v1357 = vxor.u32 %v1341, 2147483648
      %v1358 = vxor.u32 %v1342, 2147483648
      %v1359 = vxor.u32 %v1343, 2147483648
      %v1360 = vxor.u32 %v1344, 2147483648
      %v1361 = vxor.u32 %v1345, 2147483648
      %v1362 = vxor.u32 %v1346, 2147483648
      %v1363 = vxor.u32 %v1347, 2147483648
      %v1364 = vxor.u32 %v1348, 2147483648
      %v1365 = vxor.u32 %v1349, 2147483648
      %v1366 = vmul.f32 %v1350, 1.442695
      %v1367 = vpow.pop %v1366
      %v1368 = vmul.f32 %v1351, 1.442695
      %v1369 = vpow.pop %v1368
      %v1370 = vmul.f32 %v1352, 1.442695
      %v1371 = vpow.pop %v1370
      %v1372 = vmul.f32 %v1353, 1.442695
      %v1373 = vpow.pop %v1372
      %v1374 = vmul.f32 %v1354, 1.442695
      %v1375 = vpow.pop %v1374
      %v1376 = vmul.f32 %v1355, 1.442695
      %v1377 = vpow.pop %v1376
      %v1378 = vmul.f32 %v1356, 1.442695
      %v1379 = vpow.pop %v1378
      %v1380 = vmul.f32 %v1357, 1.442695
      %v1381 = vpow.pop %v1380
      %v1382 = vmul.f32 %v1358, 1.442695
      %v1383 = vpow.pop %v1382
      %v1384 = vmul.f32 %v1359, 1.442695
      %v1385 = vpow.pop %v1384
      %v1386 = vmul.f32 %v1360, 1.442695
      %v1387 = vpow.pop %v1386
      %v1388 = vmul.f32 %v1361, 1.442695
      %v1389 = vpow.pop %v1388
      %v1390 = vmul.f32 %v1362, 1.442695
      %v1391 = vpow.pop %v1390
      %v1392 = vmul.f32 %v1363, 1.442695
      %v1393 = vpow.pop %v1392
      %v1394 = vmul.f32 %v1364, 1.442695
      %v1395 = vpow.pop %v1394
      %v1396 = vmul.f32 %v1365, 1.442695
      %v1397 = vpow.pop %v1396
      %v1398 = vadd.f32 %v1367, 1.0
      %v1399 = vadd.f32 %v1369, 1.0
      %v1400 = vadd.f32 %v1371, 1.0
      %v1401 = vadd.f32 %v1373, 1.0
      %v1402 = vadd.f32 %v1375, 1.0
      %v1403 = vadd.f32 %v1377, 1.0
      %v1404 = vadd.f32 %v1379, 1.0
      %v1405 = vadd.f32 %v1381, 1.0
      %v1406 = vadd.f32 %v1383, 1.0
      %v1407 = vadd.f32 %v1385, 1.0
      %v1408 = vadd.f32 %v1387, 1.0
      %v1409 = vadd.f32 %v1389, 1.0
      %v1410 = vadd.f32 %v1391, 1.0
      %v1411 = vadd.f32 %v1393, 1.0
      %v1412 = vadd.f32 %v1395, 1.0
      %v1413 = vadd.f32 %v1397, 1.0
      %v1414 = vrcp.pop %v1398
      %v1415 = vmul.f32 1.0, %v1414
      %v1416 = vrcp.pop %v1399
      %v1417 = vmul.f32 1.0, %v1416
      %v1418 = vrcp.pop %v1400
      %v1419 = vmul.f32 1.0, %v1418
      %v1420 = vrcp.pop %v1401
      %v1421 = vmul.f32 1.0, %v1420
      %v1422 = vrcp.pop %v1402
      %v1423 = vmul.f32 1.0, %v1422
      %v1424 = vrcp.pop %v1403
      %v1425 = vmul.f32 1.0, %v1424
      %v1426 = vrcp.pop %v1404
      %v1427 = vmul.f32 1.0, %v1426
      %v1428 = vrcp.pop %v1405
      %v1429 = vmul.f32 1.0, %v1428
      %v1430 = vrcp.pop %v1406
      %v1431 = vmul.f32 1.0, %v1430
      %v1432 = vrcp.pop %v1407
      %v1433 = vmul.f32 1.0, %v1432
      %v1434 = vrcp.pop %v1408
      %v1435 = vmul.f32 1.0, %v1434
      %v1436 = vrcp.pop %v1409
      %v1437 = vmul.f32 1.0, %v1436
      %v1438 = vrcp.pop %v1410
      %v1439 = vmul.f32 1.0, %v1438
      %v1440 = vrcp.pop %v1411
      %v1441 = vmul.f32 1.0, %v1440
      %v1442 = vrcp.pop %v1412
      %v1443 = vmul.f32 1.0, %v1442
      %v1444 = vrcp.pop %v1413
      %v1445 = vmul.f32 1.0, %v1444
      %vm1446 = vcmask 7168
      %1447 = vst.msk [vmem:[%s390] sm:$0xff] %vm1446, %v1415
      %1448 = vst.msk [vmem:[%s390 + $0x8] sm:$0xff] %vm1446, %v1417
      %1449 = vst.msk [vmem:[%s390 + $0x10] sm:$0xff] %vm1446, %v1419
      %1450 = vst.msk [vmem:[%s390 + $0x18] sm:$0xff] %vm1446, %v1421
      %1451 = vst.msk [vmem:[%s390 + $0x20] sm:$0xff] %vm1446, %v1423
      %1452 = vst.msk [vmem:[%s390 + $0x28] sm:$0xff] %vm1446, %v1425
      %1453 = vst.msk [vmem:[%s390 + $0x30] sm:$0xff] %vm1446, %v1427
      %1454 = vst.msk [vmem:[%s390 + $0x38] sm:$0xff] %vm1446, %v1429
      %1455 = vst.msk [vmem:[%s390 + $0x40] sm:$0xff] %vm1446, %v1431
      %1456 = vst.msk [vmem:[%s390 + $0x48] sm:$0xff] %vm1446, %v1433
      %1457 = vst.msk [vmem:[%s390 + $0x50] sm:$0xff] %vm1446, %v1435
      %1458 = vst.msk [vmem:[%s390 + $0x58] sm:$0xff] %vm1446, %v1437
      %1459 = vst.msk [vmem:[%s390 + $0x60] sm:$0xff] %vm1446, %v1439
      %1460 = vst.msk [vmem:[%s390 + $0x68] sm:$0xff] %vm1446, %v1441
      %1461 = vst.msk [vmem:[%s390 + $0x70] sm:$0xff] %vm1446, %v1443
      %1462 = vst.msk [vmem:[%s390 + $0x78] sm:$0xff] %vm1446, %v1445
      %s1463 = smul.u32 16, %s24
      %p1464 = scmp.lt.s32.totalorder %s1463, 63
      %s1465 = scalar_select %p1464, %s1463, 63
      %s1466 = smul.addr %s1465, 8
      %s1467 = scalar_lea.vmem %s11, %s1466
      // Predicated region
      $region65: #{tpu_custom_call.1} parent=63 // pred_check
        %p1468 = pneg %p278
      $region66: #{tpu_custom_call.1} parent=63 // pred_check_branch
        %1470 = sbr.rel (%p1468) target = $region68
      $region67: #{tpu_custom_call.1} parent=63 // pred_region
        %s1471 = smul.u32 16, %s24
      $region68: #{tpu_custom_call.1} parent=63 // pred_fallthru
        _
    $region64: #{tpu_custom_call.1} parent=5 // pred_fallthru
      _
    %p1472 = scmp.le.s32.totalorder 2, %s19
    // Predicated region
    $region69: #{tpu_custom_call.1} parent=5 // pred_check
      %p1473 = pneg %p1472
    $region70: #{tpu_custom_call.1} parent=5 // pred_check_branch
      %1475 = sbr.rel (%p1473) target = $region72
    $region71: #{tpu_custom_call.1} parent=5 // pred_region
      %s1476 = ssub.s32 %s19, 2
      // Predicated region
      $region73: #{tpu_custom_call.1} parent=71 // pred_check
        %p1477 = pneg %p284
      $region74: #{tpu_custom_call.1} parent=71 // pred_check_branch
        %1479 = sbr.rel (%p1477) target = $region76
      $region75: #{tpu_custom_call.1} parent=71 // pred_region
        %s1480 = smul.u32 16, %s25
        %p1481 = scmp.lt.s32.totalorder %s1480, 63
        %s1482 = scalar_select %p1481, %s1480, 63
        %s1483 = smul.addr %s1482, 8
        %s1484 = scalar_lea.vmem %s11, %s1483
      $region76: #{tpu_custom_call.1} parent=71 // pred_fallthru
        _
    $region72: #{tpu_custom_call.1} parent=5 // pred_fallthru
      _
  $region6: #{tpu_custom_call.1} parent=0 // loop_footer
    %s23 = sadd.s32 1, %s19
  $region7: #{tpu_custom_call.1} parent=0 // loop_footer_branch
    %18 = sbr.rel target = $region3
  $region8: #{tpu_custom_call.1} parent=0 // loop_exit
    _

</llo_original>
